<compile_context>
chip_gen: v5e
topology: v5e:2x2
jax: 0.10.0
libtpu: 0.0.40
codegen_flags: <defaults>
</compile_context>

<pallas_src>
import jax
import jax.numpy as jnp
from jax.experimental import pallas as pl
from jax.experimental.pallas import tpu as pltpu

# ----------------------------- model dims ---------------------------------
T   = 8    # seq_len
B   = 2    # real batch size
BP  = 8    # padded batch size (one full sublane tile)
NF  = 4    # n_features
RNN = 32   # rnn_dim
DEC = 32   # dec1_dim


# ----------------------- fused NAOMI forward kernel ------------------------
def naomi_fused_kernel(cat_ref, tgt_ref, m_ref,
                       wih_ref, gxb_ref, whh_ref, bhhn_ref,
                       w1f_ref, w1b_ref, b1_ref, w2_ref, b2_ref,
                       pred_ref, loss_ref, pe_ref,
                       hf_scr, hb_scr):
    H = RNN
    TB = T * BP

    # --- hoisted input-to-hidden GEMM, both directions at once -------------
    # cat_ref row-block t = [fwd_in(t) | bwd_in(T-1-t)]; wih is block-diagonal
    # with gate-column layout [r_f r_b z_f z_b n_f n_b].
    gx = (jnp.dot(cat_ref[...], wih_ref[...],
                  preferred_element_type=jnp.float32)
          + gxb_ref[...])                                            # (TB, 6H)

    whh = whh_ref[...]                                               # (2H,6H) bf16
    bhhn = jnp.broadcast_to(bhhn_ref[...], (BP, 2 * H))              # hoisted bcast

    # --- fused fwd/bwd recurrence (fully unrolled, one MXU pass / step) ----
    h = jnp.zeros((BP, 2 * H), jnp.float32)                          # [h_fwd | h_bwd]
    for t in range(T):
        gx_t = gx[t * BP:(t + 1) * BP, :]                            # aligned slice
        gh = jnp.dot(h.astype(jnp.bfloat16), whh,
                     preferred_element_type=jnp.float32)             # (BP, 6H)
        s_rz = jax.nn.sigmoid(gx_t[:, :4 * H] + gh[:, :4 * H])       # [r_f r_b z_f z_b]
        r = s_rz[:, :2 * H]
        z = s_rz[:, 2 * H:]
        n = jnp.tanh(gx_t[:, 4 * H:] + r * (gh[:, 4 * H:] + bhhn))
        h = (1.0 - z) * n + z * h
        hf_scr[t * BP:(t + 1) * BP, :] = h            # fwd half -> decoder time t
        hb_scr[(T - 1 - t) * BP:(T - t) * BP, :] = h  # bwd half -> decoder time T-1-t

    # --- batched decoder on the full slabs (zero-padded split weights) -----
    hid = jnp.maximum(
        jnp.dot(hf_scr[...], w1f_ref[...], preferred_element_type=jnp.float32)
        + jnp.dot(hb_scr[...], w1b_ref[...], preferred_element_type=jnp.float32)
        + b1_ref[...], 0.0)
    dec = jnp.dot(hid, w2_ref[...], preferred_element_type=jnp.float32) + b2_ref[...]

    tgt = tgt_ref[...]
    msk = m_ref[...]
    pred = msk * tgt + (1.0 - msk) * dec                             # keep observed
    pred_ref[...] = pred

    # --- loss reductions on real batch rows only ----------------------------
    row = jax.lax.broadcasted_iota(jnp.int32, (TB, 1), 0)
    valid = (jnp.bitwise_and(row, BP - 1) < B).astype(jnp.float32)   # (TB, 1)
    abs_err = jnp.abs(pred - tgt) * valid
    loss_ref[0, 0] = jnp.sum(abs_err) / float(T * B * NF)
    d = pred[:, 0:2] - tgt[:, 0:2]                                   # (x, y) error
    pe = jnp.sqrt(jnp.sum(d * d, axis=-1, keepdims=True)) * valid
    pe_ref[0, 0] = jnp.sum(pe) / float(T * B)


def naomi_fused(cat_in, tgt_flat, m_flat, kp):
    return pl.pallas_call(
        naomi_fused_kernel,
        out_shape=(
            jax.ShapeDtypeStruct((T * BP, NF), jnp.float32),
            jax.ShapeDtypeStruct((1, 1), jnp.float32),
            jax.ShapeDtypeStruct((1, 1), jnp.float32),
        ),
        out_specs=(
            pl.BlockSpec(memory_space=pltpu.MemorySpace.VMEM),
            pl.BlockSpec(memory_space=pltpu.MemorySpace.SMEM),
            pl.BlockSpec(memory_space=pltpu.MemorySpace.SMEM),
        ),
        scratch_shapes=[
            pltpu.VMEM((T * BP, 2 * RNN), jnp.float32),   # hf slab
            pltpu.VMEM((T * BP, 2 * RNN), jnp.float32),   # hb slab (time-reversed)
        ],
    )(cat_in, tgt_flat, m_flat,
      kp["wih_bd"], kp["gxb"], kp["whh_bd"], kp["bhhn"],
      kp["w1f"], kp["w1b"], kp["b1"], kp["w2"], kp["b2"])


# ------------------- kernel-ready weight preparation -----------------------
def prepare_kernel_params(p):
    H = RNN

    def split3(w):
        return w[..., :H], w[..., H:2 * H], w[..., 2 * H:]

    # block-diag input weights, gate column layout [r_f r_b z_f z_b n_f n_b]
    wfr, wfz, wfn = split3(p["wih_f"])
    wbr, wbz, wbn = split3(p["wih_b"])
    zi = jnp.zeros((NF + 1, H), jnp.float32)
    wih_bd = jnp.concatenate([
        jnp.concatenate([wfr, zi, wfz, zi, wfn, zi], axis=1),
        jnp.concatenate([zi, wbr, zi, wbz, zi, wbn], axis=1)], axis=0)  # (10, 6H)

    # block-diag recurrent weights (bf16 MXU operands, f32 accumulation)
    hfr, hfz, hfn = split3(p["whh_f"])
    hbr, hbz, hbn = split3(p["whh_b"])
    zh = jnp.zeros((H, H), jnp.float32)
    whh_bd = jnp.concatenate([
        jnp.concatenate([hfr, zh, hfz, zh, hfn, zh], axis=1),
        jnp.concatenate([zh, hbr, zh, hbz, zh, hbn], axis=1)],
        axis=0).astype(jnp.bfloat16)                                    # (2H, 6H)

    # biases: fold bih+bhh for r/z into the input-GEMM bias; keep bhh_n apart
    bifr, bifz, bifn = split3(p["bih_f"])
    bhfr, bhfz, bhfn = split3(p["bhh_f"])
    bibr, bibz, bibn = split3(p["bih_b"])
    bhbr, bhbz, bhbn = split3(p["bhh_b"])
    gxb = jnp.concatenate([bifr + bhfr, bibr + bhbr,
                           bifz + bhfz, bibz + bhbz,
                           bifn, bibn], axis=1)                         # (1, 6H)
    bhhn = jnp.concatenate([bhfn, bhbn], axis=1)                        # (1, 2H)

    # decoder: zero-padded split weights so the kernel never lane-slices h
    zw = jnp.zeros((H, DEC), jnp.float32)
    w1f = jnp.concatenate([p["w1"][:H], zw], axis=0)                    # (2H, DEC)
    w1b = jnp.concatenate([zw, p["w1"][H:]], axis=0)                    # (2H, DEC)

    return dict(wih_bd=wih_bd, gxb=gxb, whh_bd=whh_bd, bhhn=bhhn,
                w1f=w1f, w1b=w1b, b1=p["b1"], w2=p["w2"], b2=p["b2"])


# ----------------------------- parameter init ------------------------------
def init_params(key):
    def unif(k, shape, scale):
        return jax.random.uniform(k, shape, jnp.float32, -scale, scale)

    ks = jax.random.split(key, 12)
    s_gru = 1.0 / jnp.sqrt(RNN)
    p = {
        # forward GRU: input dim NF+1 (has_value + masked features)
        "wih_f": unif(ks[0], (NF + 1, 3 * RNN), s_gru),
        "whh_f": unif(ks[1], (RNN, 3 * RNN), s_gru),
        "bih_f": unif(ks[2], (1, 3 * RNN), s_gru),
        "bhh_f": unif(ks[3], (1, 3 * RNN), s_gru),
        # backward GRU: input dim NF+1 (has_value=1 + ground truth)
        "wih_b": unif(ks[4], (NF + 1, 3 * RNN), s_gru),
        "whh_b": unif(ks[5], (RNN, 3 * RNN), s_gru),
        "bih_b": unif(ks[6], (1, 3 * RNN), s_gru),
        "bhh_b": unif(ks[7], (1, 3 * RNN), s_gru),
        # dec1 MLP: 2*RNN -> DEC -> NF
        "w1": unif(ks[8], (2 * RNN, DEC), 1.0 / jnp.sqrt(2 * RNN)),
        "b1": unif(ks[9], (1, DEC), 1.0 / jnp.sqrt(2 * RNN)),
        "w2": unif(ks[10], (DEC, NF), 1.0 / jnp.sqrt(DEC)),
        "b2": unif(ks[11], (1, NF), 1.0 / jnp.sqrt(DEC)),
    }
    return p


# ----------------------------- NAOMI forward -------------------------------
def naomi_forward(params, input_bt, target_bt, mask_bt):
    # transpose(0, 1): batch-major -> time-major (as in the PyTorch module)
    x_t = jnp.transpose(input_bt, (1, 0, 2))     # (T, B, NF)
    tgt_t = jnp.transpose(target_bt, (1, 0, 2))
    m_t = jnp.transpose(mask_bt, (1, 0, 2))

    # pad batch 2 -> 8 (full sublane tile); padded rows masked out of losses
    pad = ((0, 0), (0, BP - B), (0, 0))
    x_p = jnp.pad(x_t, pad)
    tgt_p = jnp.pad(tgt_t, pad)
    m_p = jnp.pad(m_t, pad)

    # RNN inputs: [has_value, x*mask] (fwd), [1, target] reversed (bwd),
    # packed into one slab so the kernel does a single block-diag input GEMM.
    has_value = m_p[..., 0:1]
    fwd_in = jnp.concatenate([has_value, x_p * m_p], axis=-1)             # (T,BP,5)
    bwd_in = jnp.concatenate([jnp.ones_like(has_value), tgt_p], axis=-1)  # (T,BP,5)
    cat_in = jnp.concatenate([fwd_in, bwd_in[::-1]],
                             axis=-1).reshape(T * BP, 2 * (NF + 1))

    kp = prepare_kernel_params(params)
    pred_flat, loss, pe = naomi_fused(cat_in,
                                      tgt_p.reshape(T * BP, NF),
                                      m_p.reshape(T * BP, NF), kp)

    pred = jnp.transpose(pred_flat.reshape(T, BP, NF)[:, :B, :], (1, 0, 2))
    return {
        "total_loss": loss[0, 0],
        "pred_pe": pe[0, 0],
        "pred": pred,                 # (B, T, NF)
        "target": target_bt,
        "mask": mask_bt,
    }


# --------------------------------- main ------------------------------------
if __name__ == "__main__":
    key = jax.random.PRNGKey(0)
    kx, kmask, kparam = jax.random.split(key, 3)

    # data[0] == data[1] style input (target == input here)
    input_bt = jax.random.normal(kx, (B, T, NF), dtype=jnp.float32)
    target_bt = input_bt

    # deterministic uniform missing mask: same across batch & features,
    # first/last frames always observed (stand-in for generate_mask).
    missing_rate = 0.5
    keep = (jax.random.uniform(kmask, (T,)) > missing_rate).astype(jnp.float32)
    keep = keep.at[0].set(1.0).at[-1].set(1.0)
    mask_bt = jnp.broadcast_to(keep[None, :, None], (B, T, NF)).astype(jnp.float32)

    params = init_params(kparam)

    ret = jax.jit(naomi_forward)(params, input_bt, target_bt, mask_bt)
    jax.block_until_ready(ret["pred"])
    jax.block_until_ready(ret["total_loss"])

    assert ret["pred"].shape == (B, T, NF)
    assert jnp.isfinite(ret["total_loss"]) and jnp.isfinite(ret["pred_pe"])
    print("KERNEL_OK")
</pallas_src>

<mosaic_0001>
module attributes {stable_mosaic.version = 11 : i64} {
  func.func @naomi_fused_kernel(%arg0: memref<64x10xf32, #tpu.memory_space<vmem>>, %arg1: memref<64x4xf32, #tpu.memory_space<vmem>>, %arg2: memref<64x4xf32, #tpu.memory_space<vmem>>, %arg3: memref<10x192xf32, #tpu.memory_space<vmem>>, %arg4: memref<1x192xf32, #tpu.memory_space<vmem>>, %arg5: memref<64x192xbf16, #tpu.memory_space<vmem>>, %arg6: memref<1x64xf32, #tpu.memory_space<vmem>>, %arg7: memref<64x32xf32, #tpu.memory_space<vmem>>, %arg8: memref<64x32xf32, #tpu.memory_space<vmem>>, %arg9: memref<1x32xf32, #tpu.memory_space<vmem>>, %arg10: memref<32x4xf32, #tpu.memory_space<vmem>>, %arg11: memref<1x4xf32, #tpu.memory_space<vmem>>, %arg12: memref<64x4xf32, #tpu.memory_space<vmem>>, %arg13: memref<1x1xf32, #tpu.memory_space<smem>>, %arg14: memref<1x1xf32, #tpu.memory_space<smem>>, %arg15: memref<64x64xf32, #tpu.memory_space<vmem>>, %arg16: memref<64x64xf32, #tpu.memory_space<vmem>>) attributes {dimension_semantics = [], scalar_prefetch = 0 : i64, scratch_operands = 2 : i64, tpu.core_type = #tpu.core_type<tc>} {
    %c0 = arith.constant 0 : index
    %c0_0 = arith.constant 0 : index
    %0 = vector.load %arg0[%c0, %c0_0] : memref<64x10xf32, #tpu.memory_space<vmem>>, vector<64x10xf32>
    %c0_1 = arith.constant 0 : index
    %c0_2 = arith.constant 0 : index
    %1 = vector.load %arg3[%c0_1, %c0_2] : memref<10x192xf32, #tpu.memory_space<vmem>>, vector<10x192xf32>
    %cst = arith.constant dense<0.000000e+00> : vector<64x192xf32>
    %2 = tpu.matmul %0, %1, %cst {dimension_numbers = #tpu.dot_dimension_numbers<[1], [0], [0], [1], [0, 0, 1, 1], [], []>} : vector<64x10xf32>, vector<10x192xf32>, vector<64x192xf32> -> vector<64x192xf32>
    %c0_3 = arith.constant 0 : index
    %c0_4 = arith.constant 0 : index
    %3 = vector.load %arg4[%c0_3, %c0_4] : memref<1x192xf32, #tpu.memory_space<vmem>>, vector<1x192xf32>
    %4 = vector.broadcast %3 : vector<1x192xf32> to vector<64x192xf32>
    %5 = arith.addf %2, %4 : vector<64x192xf32>
    %c0_5 = arith.constant 0 : index
    %c0_6 = arith.constant 0 : index
    %6 = vector.load %arg5[%c0_5, %c0_6] : memref<64x192xbf16, #tpu.memory_space<vmem>>, vector<64x192xbf16>
    %c0_7 = arith.constant 0 : index
    %c0_8 = arith.constant 0 : index
    %7 = vector.load %arg6[%c0_7, %c0_8] : memref<1x64xf32, #tpu.memory_space<vmem>>, vector<1x64xf32>
    %8 = vector.shape_cast %7 : vector<1x64xf32> to vector<1x64xf32>
    %9 = vector.broadcast %8 : vector<1x64xf32> to vector<8x64xf32>
    %cst_9 = arith.constant 0.000000e+00 : f32
    %10 = vector.broadcast %cst_9 : f32 to vector<8x64xf32>
    %11 = vector.extract_strided_slice %5 {offsets = [0, 0], sizes = [8, 192], strides = [1, 1]} : vector<64x192xf32> to vector<8x192xf32>
    %12 = arith.truncf %10 : vector<8x64xf32> to vector<8x64xbf16>
    %cst_10 = arith.constant dense<0.000000e+00> : vector<8x192xf32>
    %13 = tpu.matmul %12, %6, %cst_10 {dimension_numbers = #tpu.dot_dimension_numbers<[1], [0], [0], [1], [0, 0, 1, 1], [], []>} : vector<8x64xbf16>, vector<64x192xbf16>, vector<8x192xf32> -> vector<8x192xf32>
    %14 = vector.extract_strided_slice %11 {offsets = [0, 0], sizes = [8, 128], strides = [1, 1]} : vector<8x192xf32> to vector<8x128xf32>
    %15 = vector.extract_strided_slice %13 {offsets = [0, 0], sizes = [8, 128], strides = [1, 1]} : vector<8x192xf32> to vector<8x128xf32>
    %16 = arith.addf %14, %15 : vector<8x128xf32>
    %17 = arith.negf %16 : vector<8x128xf32>
    %18 = math.exp %17 : vector<8x128xf32>
    %cst_11 = arith.constant 1.000000e+00 : f32
    %19 = vector.broadcast %cst_11 : f32 to vector<8x128xf32>
    %20 = arith.addf %19, %18 : vector<8x128xf32>
    %21 = arith.divf %19, %20 : vector<8x128xf32>
    %22 = vector.extract_strided_slice %21 {offsets = [0, 0], sizes = [8, 64], strides = [1, 1]} : vector<8x128xf32> to vector<8x64xf32>
    %23 = vector.extract_strided_slice %21 {offsets = [0, 64], sizes = [8, 64], strides = [1, 1]} : vector<8x128xf32> to vector<8x64xf32>
    %24 = vector.extract_strided_slice %11 {offsets = [0, 128], sizes = [8, 64], strides = [1, 1]} : vector<8x192xf32> to vector<8x64xf32>
    %25 = vector.extract_strided_slice %13 {offsets = [0, 128], sizes = [8, 64], strides = [1, 1]} : vector<8x192xf32> to vector<8x64xf32>
    %26 = arith.addf %25, %9 : vector<8x64xf32>
    %27 = arith.mulf %22, %26 : vector<8x64xf32>
    %28 = arith.addf %24, %27 : vector<8x64xf32>
    %29 = math.tanh %28 : vector<8x64xf32>
    %cst_12 = arith.constant 1.000000e+00 : f32
    %30 = vector.broadcast %cst_12 : f32 to vector<8x64xf32>
    %31 = arith.subf %30, %23 : vector<8x64xf32>
    %32 = arith.mulf %31, %29 : vector<8x64xf32>
    %33 = arith.mulf %23, %10 : vector<8x64xf32>
    %34 = arith.addf %32, %33 : vector<8x64xf32>
    %c0_13 = arith.constant 0 : index
    %c0_14 = arith.constant 0 : index
    %35 = vector.load %arg15[%c0_13, %c0_14] : memref<64x64xf32, #tpu.memory_space<vmem>>, vector<8x64xf32>
    tpu.vector_store %arg15[%c0_13, %c0_14], %34 {strides = array<i32>} : memref<64x64xf32, #tpu.memory_space<vmem>>, vector<8x64xf32>,
    %c56 = arith.constant 56 : index
    %c0_15 = arith.constant 0 : index
    %36 = vector.load %arg16[%c56, %c0_15] : memref<64x64xf32, #tpu.memory_space<vmem>>, vector<8x64xf32>
    tpu.vector_store %arg16[%c56, %c0_15], %34 {strides = array<i32>} : memref<64x64xf32, #tpu.memory_space<vmem>>, vector<8x64xf32>,
    %37 = vector.extract_strided_slice %5 {offsets = [8, 0], sizes = [8, 192], strides = [1, 1]} : vector<64x192xf32> to vector<8x192xf32>
    %38 = arith.truncf %34 : vector<8x64xf32> to vector<8x64xbf16>
    %cst_16 = arith.constant dense<0.000000e+00> : vector<8x192xf32>
    %39 = tpu.matmul %38, %6, %cst_16 {dimension_numbers = #tpu.dot_dimension_numbers<[1], [0], [0], [1], [0, 0, 1, 1], [], []>} : vector<8x64xbf16>, vector<64x192xbf16>, vector<8x192xf32> -> vector<8x192xf32>
    %40 = vector.extract_strided_slice %37 {offsets = [0, 0], sizes = [8, 128], strides = [1, 1]} : vector<8x192xf32> to vector<8x128xf32>
    %41 = vector.extract_strided_slice %39 {offsets = [0, 0], sizes = [8, 128], strides = [1, 1]} : vector<8x192xf32> to vector<8x128xf32>
    %42 = arith.addf %40, %41 : vector<8x128xf32>
    %43 = arith.negf %42 : vector<8x128xf32>
    %44 = math.exp %43 : vector<8x128xf32>
    %cst_17 = arith.constant 1.000000e+00 : f32
    %45 = vector.broadcast %cst_17 : f32 to vector<8x128xf32>
    %46 = arith.addf %45, %44 : vector<8x128xf32>
    %47 = arith.divf %45, %46 : vector<8x128xf32>
    %48 = vector.extract_strided_slice %47 {offsets = [0, 0], sizes = [8, 64], strides = [1, 1]} : vector<8x128xf32> to vector<8x64xf32>
    %49 = vector.extract_strided_slice %47 {offsets = [0, 64], sizes = [8, 64], strides = [1, 1]} : vector<8x128xf32> to vector<8x64xf32>
    %50 = vector.extract_strided_slice %37 {offsets = [0, 128], sizes = [8, 64], strides = [1, 1]} : vector<8x192xf32> to vector<8x64xf32>
    %51 = vector.extract_strided_slice %39 {offsets = [0, 128], sizes = [8, 64], strides = [1, 1]} : vector<8x192xf32> to vector<8x64xf32>
    %52 = arith.addf %51, %9 : vector<8x64xf32>
    %53 = arith.mulf %48, %52 : vector<8x64xf32>
    %54 = arith.addf %50, %53 : vector<8x64xf32>
    %55 = math.tanh %54 : vector<8x64xf32>
    %cst_18 = arith.constant 1.000000e+00 : f32
    %56 = vector.broadcast %cst_18 : f32 to vector<8x64xf32>
    %57 = arith.subf %56, %49 : vector<8x64xf32>
    %58 = arith.mulf %57, %55 : vector<8x64xf32>
    %59 = arith.mulf %49, %34 : vector<8x64xf32>
    %60 = arith.addf %58, %59 : vector<8x64xf32>
    %c8 = arith.constant 8 : index
    %c0_19 = arith.constant 0 : index
    %61 = vector.load %arg15[%c8, %c0_19] : memref<64x64xf32, #tpu.memory_space<vmem>>, vector<8x64xf32>
    tpu.vector_store %arg15[%c8, %c0_19], %60 {strides = array<i32>} : memref<64x64xf32, #tpu.memory_space<vmem>>, vector<8x64xf32>,
    %c48 = arith.constant 48 : index
    %c0_20 = arith.constant 0 : index
    %62 = vector.load %arg16[%c48, %c0_20] : memref<64x64xf32, #tpu.memory_space<vmem>>, vector<8x64xf32>
    tpu.vector_store %arg16[%c48, %c0_20], %60 {strides = array<i32>} : memref<64x64xf32, #tpu.memory_space<vmem>>, vector<8x64xf32>,
    %63 = vector.extract_strided_slice %5 {offsets = [16, 0], sizes = [8, 192], strides = [1, 1]} : vector<64x192xf32> to vector<8x192xf32>
    %64 = arith.truncf %60 : vector<8x64xf32> to vector<8x64xbf16>
    %cst_21 = arith.constant dense<0.000000e+00> : vector<8x192xf32>
    %65 = tpu.matmul %64, %6, %cst_21 {dimension_numbers = #tpu.dot_dimension_numbers<[1], [0], [0], [1], [0, 0, 1, 1], [], []>} : vector<8x64xbf16>, vector<64x192xbf16>, vector<8x192xf32> -> vector<8x192xf32>
    %66 = vector.extract_strided_slice %63 {offsets = [0, 0], sizes = [8, 128], strides = [1, 1]} : vector<8x192xf32> to vector<8x128xf32>
    %67 = vector.extract_strided_slice %65 {offsets = [0, 0], sizes = [8, 128], strides = [1, 1]} : vector<8x192xf32> to vector<8x128xf32>
    %68 = arith.addf %66, %67 : vector<8x128xf32>
    %69 = arith.negf %68 : vector<8x128xf32>
    %70 = math.exp %69 : vector<8x128xf32>
    %cst_22 = arith.constant 1.000000e+00 : f32
    %71 = vector.broadcast %cst_22 : f32 to vector<8x128xf32>
    %72 = arith.addf %71, %70 : vector<8x128xf32>
    %73 = arith.divf %71, %72 : vector<8x128xf32>
    %74 = vector.extract_strided_slice %73 {offsets = [0, 0], sizes = [8, 64], strides = [1, 1]} : vector<8x128xf32> to vector<8x64xf32>
    %75 = vector.extract_strided_slice %73 {offsets = [0, 64], sizes = [8, 64], strides = [1, 1]} : vector<8x128xf32> to vector<8x64xf32>
    %76 = vector.extract_strided_slice %63 {offsets = [0, 128], sizes = [8, 64], strides = [1, 1]} : vector<8x192xf32> to vector<8x64xf32>
    %77 = vector.extract_strided_slice %65 {offsets = [0, 128], sizes = [8, 64], strides = [1, 1]} : vector<8x192xf32> to vector<8x64xf32>
    %78 = arith.addf %77, %9 : vector<8x64xf32>
    %79 = arith.mulf %74, %78 : vector<8x64xf32>
    %80 = arith.addf %76, %79 : vector<8x64xf32>
    %81 = math.tanh %80 : vector<8x64xf32>
    %cst_23 = arith.constant 1.000000e+00 : f32
    %82 = vector.broadcast %cst_23 : f32 to vector<8x64xf32>
    %83 = arith.subf %82, %75 : vector<8x64xf32>
    %84 = arith.mulf %83, %81 : vector<8x64xf32>
    %85 = arith.mulf %75, %60 : vector<8x64xf32>
    %86 = arith.addf %84, %85 : vector<8x64xf32>
    %c16 = arith.constant 16 : index
    %c0_24 = arith.constant 0 : index
    %87 = vector.load %arg15[%c16, %c0_24] : memref<64x64xf32, #tpu.memory_space<vmem>>, vector<8x64xf32>
    tpu.vector_store %arg15[%c16, %c0_24], %86 {strides = array<i32>} : memref<64x64xf32, #tpu.memory_space<vmem>>, vector<8x64xf32>,
    %c40 = arith.constant 40 : index
    %c0_25 = arith.constant 0 : index
    %88 = vector.load %arg16[%c40, %c0_25] : memref<64x64xf32, #tpu.memory_space<vmem>>, vector<8x64xf32>
    tpu.vector_store %arg16[%c40, %c0_25], %86 {strides = array<i32>} : memref<64x64xf32, #tpu.memory_space<vmem>>, vector<8x64xf32>,
    %89 = vector.extract_strided_slice %5 {offsets = [24, 0], sizes = [8, 192], strides = [1, 1]} : vector<64x192xf32> to vector<8x192xf32>
    %90 = arith.truncf %86 : vector<8x64xf32> to vector<8x64xbf16>
    %cst_26 = arith.constant dense<0.000000e+00> : vector<8x192xf32>
    %91 = tpu.matmul %90, %6, %cst_26 {dimension_numbers = #tpu.dot_dimension_numbers<[1], [0], [0], [1], [0, 0, 1, 1], [], []>} : vector<8x64xbf16>, vector<64x192xbf16>, vector<8x192xf32> -> vector<8x192xf32>
    %92 = vector.extract_strided_slice %89 {offsets = [0, 0], sizes = [8, 128], strides = [1, 1]} : vector<8x192xf32> to vector<8x128xf32>
    %93 = vector.extract_strided_slice %91 {offsets = [0, 0], sizes = [8, 128], strides = [1, 1]} : vector<8x192xf32> to vector<8x128xf32>
    %94 = arith.addf %92, %93 : vector<8x128xf32>
    %95 = arith.negf %94 : vector<8x128xf32>
    %96 = math.exp %95 : vector<8x128xf32>
    %cst_27 = arith.constant 1.000000e+00 : f32
    %97 = vector.broadcast %cst_27 : f32 to vector<8x128xf32>
    %98 = arith.addf %97, %96 : vector<8x128xf32>
    %99 = arith.divf %97, %98 : vector<8x128xf32>
    %100 = vector.extract_strided_slice %99 {offsets = [0, 0], sizes = [8, 64], strides = [1, 1]} : vector<8x128xf32> to vector<8x64xf32>
    %101 = vector.extract_strided_slice %99 {offsets = [0, 64], sizes = [8, 64], strides = [1, 1]} : vector<8x128xf32> to vector<8x64xf32>
    %102 = vector.extract_strided_slice %89 {offsets = [0, 128], sizes = [8, 64], strides = [1, 1]} : vector<8x192xf32> to vector<8x64xf32>
    %103 = vector.extract_strided_slice %91 {offsets = [0, 128], sizes = [8, 64], strides = [1, 1]} : vector<8x192xf32> to vector<8x64xf32>
    %104 = arith.addf %103, %9 : vector<8x64xf32>
    %105 = arith.mulf %100, %104 : vector<8x64xf32>
    %106 = arith.addf %102, %105 : vector<8x64xf32>
    %107 = math.tanh %106 : vector<8x64xf32>
    %cst_28 = arith.constant 1.000000e+00 : f32
    %108 = vector.broadcast %cst_28 : f32 to vector<8x64xf32>
    %109 = arith.subf %108, %101 : vector<8x64xf32>
    %110 = arith.mulf %109, %107 : vector<8x64xf32>
    %111 = arith.mulf %101, %86 : vector<8x64xf32>
    %112 = arith.addf %110, %111 : vector<8x64xf32>
    %c24 = arith.constant 24 : index
    %c0_29 = arith.constant 0 : index
    %113 = vector.load %arg15[%c24, %c0_29] : memref<64x64xf32, #tpu.memory_space<vmem>>, vector<8x64xf32>
    tpu.vector_store %arg15[%c24, %c0_29], %112 {strides = array<i32>} : memref<64x64xf32, #tpu.memory_space<vmem>>, vector<8x64xf32>,
    %c32 = arith.constant 32 : index
    %c0_30 = arith.constant 0 : index
    %114 = vector.load %arg16[%c32, %c0_30] : memref<64x64xf32, #tpu.memory_space<vmem>>, vector<8x64xf32>
    tpu.vector_store %arg16[%c32, %c0_30], %112 {strides = array<i32>} : memref<64x64xf32, #tpu.memory_space<vmem>>, vector<8x64xf32>,
    %115 = vector.extract_strided_slice %5 {offsets = [32, 0], sizes = [8, 192], strides = [1, 1]} : vector<64x192xf32> to vector<8x192xf32>
    %116 = arith.truncf %112 : vector<8x64xf32> to vector<8x64xbf16>
    %cst_31 = arith.constant dense<0.000000e+00> : vector<8x192xf32>
    %117 = tpu.matmul %116, %6, %cst_31 {dimension_numbers = #tpu.dot_dimension_numbers<[1], [0], [0], [1], [0, 0, 1, 1], [], []>} : vector<8x64xbf16>, vector<64x192xbf16>, vector<8x192xf32> -> vector<8x192xf32>
    %118 = vector.extract_strided_slice %115 {offsets = [0, 0], sizes = [8, 128], strides = [1, 1]} : vector<8x192xf32> to vector<8x128xf32>
    %119 = vector.extract_strided_slice %117 {offsets = [0, 0], sizes = [8, 128], strides = [1, 1]} : vector<8x192xf32> to vector<8x128xf32>
    %120 = arith.addf %118, %119 : vector<8x128xf32>
    %121 = arith.negf %120 : vector<8x128xf32>
    %122 = math.exp %121 : vector<8x128xf32>
    %cst_32 = arith.constant 1.000000e+00 : f32
    %123 = vector.broadcast %cst_32 : f32 to vector<8x128xf32>
    %124 = arith.addf %123, %122 : vector<8x128xf32>
    %125 = arith.divf %123, %124 : vector<8x128xf32>
    %126 = vector.extract_strided_slice %125 {offsets = [0, 0], sizes = [8, 64], strides = [1, 1]} : vector<8x128xf32> to vector<8x64xf32>
    %127 = vector.extract_strided_slice %125 {offsets = [0, 64], sizes = [8, 64], strides = [1, 1]} : vector<8x128xf32> to vector<8x64xf32>
    %128 = vector.extract_strided_slice %115 {offsets = [0, 128], sizes = [8, 64], strides = [1, 1]} : vector<8x192xf32> to vector<8x64xf32>
    %129 = vector.extract_strided_slice %117 {offsets = [0, 128], sizes = [8, 64], strides = [1, 1]} : vector<8x192xf32> to vector<8x64xf32>
    %130 = arith.addf %129, %9 : vector<8x64xf32>
    %131 = arith.mulf %126, %130 : vector<8x64xf32>
    %132 = arith.addf %128, %131 : vector<8x64xf32>
    %133 = math.tanh %132 : vector<8x64xf32>
    %cst_33 = arith.constant 1.000000e+00 : f32
    %134 = vector.broadcast %cst_33 : f32 to vector<8x64xf32>
    %135 = arith.subf %134, %127 : vector<8x64xf32>
    %136 = arith.mulf %135, %133 : vector<8x64xf32>
    %137 = arith.mulf %127, %112 : vector<8x64xf32>
    %138 = arith.addf %136, %137 : vector<8x64xf32>
    %c32_34 = arith.constant 32 : index
    %c0_35 = arith.constant 0 : index
    %139 = vector.load %arg15[%c32_34, %c0_35] : memref<64x64xf32, #tpu.memory_space<vmem>>, vector<8x64xf32>
    tpu.vector_store %arg15[%c32_34, %c0_35], %138 {strides = array<i32>} : memref<64x64xf32, #tpu.memory_space<vmem>>, vector<8x64xf32>,
    %c24_36 = arith.constant 24 : index
    %c0_37 = arith.constant 0 : index
    %140 = vector.load %arg16[%c24_36, %c0_37] : memref<64x64xf32, #tpu.memory_space<vmem>>, vector<8x64xf32>
    tpu.vector_store %arg16[%c24_36, %c0_37], %138 {strides = array<i32>} : memref<64x64xf32, #tpu.memory_space<vmem>>, vector<8x64xf32>,
    %141 = vector.extract_strided_slice %5 {offsets = [40, 0], sizes = [8, 192], strides = [1, 1]} : vector<64x192xf32> to vector<8x192xf32>
    %142 = arith.truncf %138 : vector<8x64xf32> to vector<8x64xbf16>
    %cst_38 = arith.constant dense<0.000000e+00> : vector<8x192xf32>
    %143 = tpu.matmul %142, %6, %cst_38 {dimension_numbers = #tpu.dot_dimension_numbers<[1], [0], [0], [1], [0, 0, 1, 1], [], []>} : vector<8x64xbf16>, vector<64x192xbf16>, vector<8x192xf32> -> vector<8x192xf32>
    %144 = vector.extract_strided_slice %141 {offsets = [0, 0], sizes = [8, 128], strides = [1, 1]} : vector<8x192xf32> to vector<8x128xf32>
    %145 = vector.extract_strided_slice %143 {offsets = [0, 0], sizes = [8, 128], strides = [1, 1]} : vector<8x192xf32> to vector<8x128xf32>
    %146 = arith.addf %144, %145 : vector<8x128xf32>
    %147 = arith.negf %146 : vector<8x128xf32>
    %148 = math.exp %147 : vector<8x128xf32>
    %cst_39 = arith.constant 1.000000e+00 : f32
    %149 = vector.broadcast %cst_39 : f32 to vector<8x128xf32>
    %150 = arith.addf %149, %148 : vector<8x128xf32>
    %151 = arith.divf %149, %150 : vector<8x128xf32>
    %152 = vector.extract_strided_slice %151 {offsets = [0, 0], sizes = [8, 64], strides = [1, 1]} : vector<8x128xf32> to vector<8x64xf32>
    %153 = vector.extract_strided_slice %151 {offsets = [0, 64], sizes = [8, 64], strides = [1, 1]} : vector<8x128xf32> to vector<8x64xf32>
    %154 = vector.extract_strided_slice %141 {offsets = [0, 128], sizes = [8, 64], strides = [1, 1]} : vector<8x192xf32> to vector<8x64xf32>
    %155 = vector.extract_strided_slice %143 {offsets = [0, 128], sizes = [8, 64], strides = [1, 1]} : vector<8x192xf32> to vector<8x64xf32>
    %156 = arith.addf %155, %9 : vector<8x64xf32>
    %157 = arith.mulf %152, %156 : vector<8x64xf32>
    %158 = arith.addf %154, %157 : vector<8x64xf32>
    %159 = math.tanh %158 : vector<8x64xf32>
    %cst_40 = arith.constant 1.000000e+00 : f32
    %160 = vector.broadcast %cst_40 : f32 to vector<8x64xf32>
    %161 = arith.subf %160, %153 : vector<8x64xf32>
    %162 = arith.mulf %161, %159 : vector<8x64xf32>
    %163 = arith.mulf %153, %138 : vector<8x64xf32>
    %164 = arith.addf %162, %163 : vector<8x64xf32>
    %c40_41 = arith.constant 40 : index
    %c0_42 = arith.constant 0 : index
    %165 = vector.load %arg15[%c40_41, %c0_42] : memref<64x64xf32, #tpu.memory_space<vmem>>, vector<8x64xf32>
    tpu.vector_store %arg15[%c40_41, %c0_42], %164 {strides = array<i32>} : memref<64x64xf32, #tpu.memory_space<vmem>>, vector<8x64xf32>,
    %c16_43 = arith.constant 16 : index
    %c0_44 = arith.constant 0 : index
    %166 = vector.load %arg16[%c16_43, %c0_44] : memref<64x64xf32, #tpu.memory_space<vmem>>, vector<8x64xf32>
    tpu.vector_store %arg16[%c16_43, %c0_44], %164 {strides = array<i32>} : memref<64x64xf32, #tpu.memory_space<vmem>>, vector<8x64xf32>,
    %167 = vector.extract_strided_slice %5 {offsets = [48, 0], sizes = [8, 192], strides = [1, 1]} : vector<64x192xf32> to vector<8x192xf32>
    %168 = arith.truncf %164 : vector<8x64xf32> to vector<8x64xbf16>
    %cst_45 = arith.constant dense<0.000000e+00> : vector<8x192xf32>
    %169 = tpu.matmul %168, %6, %cst_45 {dimension_numbers = #tpu.dot_dimension_numbers<[1], [0], [0], [1], [0, 0, 1, 1], [], []>} : vector<8x64xbf16>, vector<64x192xbf16>, vector<8x192xf32> -> vector<8x192xf32>
    %170 = vector.extract_strided_slice %167 {offsets = [0, 0], sizes = [8, 128], strides = [1, 1]} : vector<8x192xf32> to vector<8x128xf32>
    %171 = vector.extract_strided_slice %169 {offsets = [0, 0], sizes = [8, 128], strides = [1, 1]} : vector<8x192xf32> to vector<8x128xf32>
    %172 = arith.addf %170, %171 : vector<8x128xf32>
    %173 = arith.negf %172 : vector<8x128xf32>
    %174 = math.exp %173 : vector<8x128xf32>
    %cst_46 = arith.constant 1.000000e+00 : f32
    %175 = vector.broadcast %cst_46 : f32 to vector<8x128xf32>
    %176 = arith.addf %175, %174 : vector<8x128xf32>
    %177 = arith.divf %175, %176 : vector<8x128xf32>
    %178 = vector.extract_strided_slice %177 {offsets = [0, 0], sizes = [8, 64], strides = [1, 1]} : vector<8x128xf32> to vector<8x64xf32>
    %179 = vector.extract_strided_slice %177 {offsets = [0, 64], sizes = [8, 64], strides = [1, 1]} : vector<8x128xf32> to vector<8x64xf32>
    %180 = vector.extract_strided_slice %167 {offsets = [0, 128], sizes = [8, 64], strides = [1, 1]} : vector<8x192xf32> to vector<8x64xf32>
    %181 = vector.extract_strided_slice %169 {offsets = [0, 128], sizes = [8, 64], strides = [1, 1]} : vector<8x192xf32> to vector<8x64xf32>
    %182 = arith.addf %181, %9 : vector<8x64xf32>
    %183 = arith.mulf %178, %182 : vector<8x64xf32>
    %184 = arith.addf %180, %183 : vector<8x64xf32>
    %185 = math.tanh %184 : vector<8x64xf32>
    %cst_47 = arith.constant 1.000000e+00 : f32
    %186 = vector.broadcast %cst_47 : f32 to vector<8x64xf32>
    %187 = arith.subf %186, %179 : vector<8x64xf32>
    %188 = arith.mulf %187, %185 : vector<8x64xf32>
    %189 = arith.mulf %179, %164 : vector<8x64xf32>
    %190 = arith.addf %188, %189 : vector<8x64xf32>
    %c48_48 = arith.constant 48 : index
    %c0_49 = arith.constant 0 : index
    %191 = vector.load %arg15[%c48_48, %c0_49] : memref<64x64xf32, #tpu.memory_space<vmem>>, vector<8x64xf32>
    tpu.vector_store %arg15[%c48_48, %c0_49], %190 {strides = array<i32>} : memref<64x64xf32, #tpu.memory_space<vmem>>, vector<8x64xf32>,
    %c8_50 = arith.constant 8 : index
    %c0_51 = arith.constant 0 : index
    %192 = vector.load %arg16[%c8_50, %c0_51] : memref<64x64xf32, #tpu.memory_space<vmem>>, vector<8x64xf32>
    tpu.vector_store %arg16[%c8_50, %c0_51], %190 {strides = array<i32>} : memref<64x64xf32, #tpu.memory_space<vmem>>, vector<8x64xf32>,
    %193 = vector.extract_strided_slice %5 {offsets = [56, 0], sizes = [8, 192], strides = [1, 1]} : vector<64x192xf32> to vector<8x192xf32>
    %194 = arith.truncf %190 : vector<8x64xf32> to vector<8x64xbf16>
    %cst_52 = arith.constant dense<0.000000e+00> : vector<8x192xf32>
    %195 = tpu.matmul %194, %6, %cst_52 {dimension_numbers = #tpu.dot_dimension_numbers<[1], [0], [0], [1], [0, 0, 1, 1], [], []>} : vector<8x64xbf16>, vector<64x192xbf16>, vector<8x192xf32> -> vector<8x192xf32>
    %196 = vector.extract_strided_slice %193 {offsets = [0, 0], sizes = [8, 128], strides = [1, 1]} : vector<8x192xf32> to vector<8x128xf32>
    %197 = vector.extract_strided_slice %195 {offsets = [0, 0], sizes = [8, 128], strides = [1, 1]} : vector<8x192xf32> to vector<8x128xf32>
    %198 = arith.addf %196, %197 : vector<8x128xf32>
    %199 = arith.negf %198 : vector<8x128xf32>
    %200 = math.exp %199 : vector<8x128xf32>
    %cst_53 = arith.constant 1.000000e+00 : f32
    %201 = vector.broadcast %cst_53 : f32 to vector<8x128xf32>
    %202 = arith.addf %201, %200 : vector<8x128xf32>
    %203 = arith.divf %201, %202 : vector<8x128xf32>
    %204 = vector.extract_strided_slice %203 {offsets = [0, 0], sizes = [8, 64], strides = [1, 1]} : vector<8x128xf32> to vector<8x64xf32>
    %205 = vector.extract_strided_slice %203 {offsets = [0, 64], sizes = [8, 64], strides = [1, 1]} : vector<8x128xf32> to vector<8x64xf32>
    %206 = vector.extract_strided_slice %193 {offsets = [0, 128], sizes = [8, 64], strides = [1, 1]} : vector<8x192xf32> to vector<8x64xf32>
    %207 = vector.extract_strided_slice %195 {offsets = [0, 128], sizes = [8, 64], strides = [1, 1]} : vector<8x192xf32> to vector<8x64xf32>
    %208 = arith.addf %207, %9 : vector<8x64xf32>
    %209 = arith.mulf %204, %208 : vector<8x64xf32>
    %210 = arith.addf %206, %209 : vector<8x64xf32>
    %211 = math.tanh %210 : vector<8x64xf32>
    %cst_54 = arith.constant 1.000000e+00 : f32
    %212 = vector.broadcast %cst_54 : f32 to vector<8x64xf32>
    %213 = arith.subf %212, %205 : vector<8x64xf32>
    %214 = arith.mulf %213, %211 : vector<8x64xf32>
    %215 = arith.mulf %205, %190 : vector<8x64xf32>
    %216 = arith.addf %214, %215 : vector<8x64xf32>
    %c56_55 = arith.constant 56 : index
    %c0_56 = arith.constant 0 : index
    %217 = vector.load %arg15[%c56_55, %c0_56] : memref<64x64xf32, #tpu.memory_space<vmem>>, vector<8x64xf32>
    tpu.vector_store %arg15[%c56_55, %c0_56], %216 {strides = array<i32>} : memref<64x64xf32, #tpu.memory_space<vmem>>, vector<8x64xf32>,
    %c0_57 = arith.constant 0 : index
    %c0_58 = arith.constant 0 : index
    %218 = vector.load %arg16[%c0_57, %c0_58] : memref<64x64xf32, #tpu.memory_space<vmem>>, vector<8x64xf32>
    tpu.vector_store %arg16[%c0_57, %c0_58], %216 {strides = array<i32>} : memref<64x64xf32, #tpu.memory_space<vmem>>, vector<8x64xf32>,
    %c0_59 = arith.constant 0 : index
    %c0_60 = arith.constant 0 : index
    %219 = vector.load %arg15[%c0_59, %c0_60] : memref<64x64xf32, #tpu.memory_space<vmem>>, vector<64x64xf32>
    %c0_61 = arith.constant 0 : index
    %c0_62 = arith.constant 0 : index
    %220 = vector.load %arg7[%c0_61, %c0_62] : memref<64x32xf32, #tpu.memory_space<vmem>>, vector<64x32xf32>
    %cst_63 = arith.constant dense<0.000000e+00> : vector<64x32xf32>
    %221 = tpu.matmul %219, %220, %cst_63 {dimension_numbers = #tpu.dot_dimension_numbers<[1], [0], [0], [1], [0, 0, 1, 1], [], []>} : vector<64x64xf32>, vector<64x32xf32>, vector<64x32xf32> -> vector<64x32xf32>
    %c0_64 = arith.constant 0 : index
    %c0_65 = arith.constant 0 : index
    %222 = vector.load %arg16[%c0_64, %c0_65] : memref<64x64xf32, #tpu.memory_space<vmem>>, vector<64x64xf32>
    %c0_66 = arith.constant 0 : index
    %c0_67 = arith.constant 0 : index
    %223 = vector.load %arg8[%c0_66, %c0_67] : memref<64x32xf32, #tpu.memory_space<vmem>>, vector<64x32xf32>
    %cst_68 = arith.constant dense<0.000000e+00> : vector<64x32xf32>
    %224 = tpu.matmul %222, %223, %cst_68 {dimension_numbers = #tpu.dot_dimension_numbers<[1], [0], [0], [1], [0, 0, 1, 1], [], []>} : vector<64x64xf32>, vector<64x32xf32>, vector<64x32xf32> -> vector<64x32xf32>
    %225 = arith.addf %221, %224 : vector<64x32xf32>
    %c0_69 = arith.constant 0 : index
    %c0_70 = arith.constant 0 : index
    %226 = vector.load %arg9[%c0_69, %c0_70] : memref<1x32xf32, #tpu.memory_space<vmem>>, vector<1x32xf32>
    %227 = vector.broadcast %226 : vector<1x32xf32> to vector<64x32xf32>
    %228 = arith.addf %225, %227 : vector<64x32xf32>
    %cst_71 = arith.constant 0.000000e+00 : f32
    %229 = vector.broadcast %cst_71 : f32 to vector<64x32xf32>
    %230 = arith.maximumf %228, %229 : vector<64x32xf32>
    %c0_72 = arith.constant 0 : index
    %c0_73 = arith.constant 0 : index
    %231 = vector.load %arg10[%c0_72, %c0_73] : memref<32x4xf32, #tpu.memory_space<vmem>>, vector<32x4xf32>
    %cst_74 = arith.constant dense<0.000000e+00> : vector<64x4xf32>
    %232 = tpu.matmul %230, %231, %cst_74 {dimension_numbers = #tpu.dot_dimension_numbers<[1], [0], [0], [1], [0, 0, 1, 1], [], []>} : vector<64x32xf32>, vector<32x4xf32>, vector<64x4xf32> -> vector<64x4xf32>
    %c0_75 = arith.constant 0 : index
    %c0_76 = arith.constant 0 : index
    %233 = vector.load %arg11[%c0_75, %c0_76] : memref<1x4xf32, #tpu.memory_space<vmem>>, vector<1x4xf32>
    %234 = vector.broadcast %233 : vector<1x4xf32> to vector<64x4xf32>
    %235 = arith.addf %232, %234 : vector<64x4xf32>
    %c0_77 = arith.constant 0 : index
    %c0_78 = arith.constant 0 : index
    %236 = vector.load %arg1[%c0_77, %c0_78] : memref<64x4xf32, #tpu.memory_space<vmem>>, vector<64x4xf32>
    %c0_79 = arith.constant 0 : index
    %c0_80 = arith.constant 0 : index
    %237 = vector.load %arg2[%c0_79, %c0_80] : memref<64x4xf32, #tpu.memory_space<vmem>>, vector<64x4xf32>
    %238 = arith.mulf %237, %236 : vector<64x4xf32>
    %cst_81 = arith.constant 1.000000e+00 : f32
    %239 = vector.broadcast %cst_81 : f32 to vector<64x4xf32>
    %240 = arith.subf %239, %237 : vector<64x4xf32>
    %241 = arith.mulf %240, %235 : vector<64x4xf32>
    %242 = arith.addf %238, %241 : vector<64x4xf32>
    %c0_82 = arith.constant 0 : index
    %c0_83 = arith.constant 0 : index
    %243 = vector.load %arg12[%c0_82, %c0_83] : memref<64x4xf32, #tpu.memory_space<vmem>>, vector<64x4xf32>
    tpu.vector_store %arg12[%c0_82, %c0_83], %242 {strides = array<i32>} : memref<64x4xf32, #tpu.memory_space<vmem>>, vector<64x4xf32>,
    %244 = tpu.iota {dimensions = array<i32: 0>} : vector<64x1xi32>
    %c7_i32 = arith.constant 7 : i32
    %245 = vector.broadcast %c7_i32 : i32 to vector<64x1xi32>
    %246 = arith.andi %244, %245 : vector<64x1xi32>
    %c2_i32 = arith.constant 2 : i32
    %247 = vector.broadcast %c2_i32 : i32 to vector<64x1xi32>
    %248 = arith.cmpi slt, %246, %247 : vector<64x1xi32>
    %249 = arith.extui %248 : vector<64x1xi1> to vector<64x1xi32>
    %250 = arith.sitofp %249 : vector<64x1xi32> to vector<64x1xf32>
    %251 = arith.subf %242, %236 : vector<64x4xf32>
    %252 = math.absf %251 : vector<64x4xf32>
    %253 = vector.broadcast %250 : vector<64x1xf32> to vector<64x4xf32>
    %254 = arith.mulf %252, %253 : vector<64x4xf32>
    %255 = vector.shape_cast %254 : vector<64x4xf32> to vector<1x64x4xf32>
    %cst_84 = arith.constant dense<0.000000e+00> : vector<1xf32>
    %256 = vector.multi_reduction <add>, %255, %cst_84 [1, 2] : vector<1x64x4xf32> to vector<1xf32>
    %257 = vector.shape_cast %256 : vector<1xf32> to vector<1x1x1xf32>
    %258 = vector.extract %257[0, 0, 0] : f32 from vector<1x1x1xf32>
    %cst_85 = arith.constant 6.400000e+01 : f32
    %259 = arith.divf %258, %cst_85 : f32
    %c0_86 = arith.constant 0 : index
    %c0_87 = arith.constant 0 : index
    %260 = memref.load %arg13[%c0_86, %c0_87] : memref<1x1xf32, #tpu.memory_space<smem>>
    memref.store %259, %arg13[%c0_86, %c0_87] : memref<1x1xf32, #tpu.memory_space<smem>>
    %261 = vector.extract_strided_slice %242 {offsets = [0, 0], sizes = [64, 2], strides = [1, 1]} : vector<64x4xf32> to vector<64x2xf32>
    %262 = vector.extract_strided_slice %236 {offsets = [0, 0], sizes = [64, 2], strides = [1, 1]} : vector<64x4xf32> to vector<64x2xf32>
    %263 = arith.subf %261, %262 : vector<64x2xf32>
    %264 = arith.mulf %263, %263 : vector<64x2xf32>
    %cst_88 = arith.constant dense<0.000000e+00> : vector<64xf32>
    %265 = vector.multi_reduction <add>, %264, %cst_88 [1] : vector<64x2xf32> to vector<64xf32>
    %266 = vector.shape_cast %265 : vector<64xf32> to vector<64x1xf32>
    %267 = math.sqrt %266 : vector<64x1xf32>
    %268 = arith.mulf %267, %250 : vector<64x1xf32>
    %269 = vector.shape_cast %268 : vector<64x1xf32> to vector<1x64x1xf32>
    %cst_89 = arith.constant dense<0.000000e+00> : vector<1xf32>
    %270 = vector.multi_reduction <add>, %269, %cst_89 [1, 2] : vector<1x64x1xf32> to vector<1xf32>
    %271 = vector.shape_cast %270 : vector<1xf32> to vector<1x1x1xf32>
    %272 = vector.extract %271[0, 0, 0] : f32 from vector<1x1x1xf32>
    %cst_90 = arith.constant 1.600000e+01 : f32
    %273 = arith.divf %272, %cst_90 : f32
    %c0_91 = arith.constant 0 : index
    %c0_92 = arith.constant 0 : index
    %274 = memref.load %arg14[%c0_91, %c0_92] : memref<1x1xf32, #tpu.memory_space<smem>>
    memref.store %273, %arg14[%c0_91, %c0_92] : memref<1x1xf32, #tpu.memory_space<smem>>
    return
  }
}

</mosaic_0001>

<llo_original>
// kernel: naomi_forward.1
$region0: #{naomi_forward.1}
  #allocation0 [shape = 'u32[]', space=smem, size = 0x4, offset = 0x4, fixed_abs, tag = 'smem constant byte address 0x4 - core index']
  #allocation1 [shape = 'u32[72,128]{1,0:T(1,128)}', space=vmem, size = 0x9000, scoped, tag = 'internal scratch']
  #allocation2 [shape = 'f32[64,64]{1,0:T(8,128)}', space=vmem, size = 0x8000, scoped, tag = 'scratch operand']
  #allocation3 [shape = 'f32[64,64]{1,0:T(8,128)}', space=vmem, size = 0x8000, scoped, tag = 'scratch operand']
  %s0 = inlined_call_operand.vmem [shape: f32[64,10], index: 0, kind: input, shape index: {}]
  %s1 = inlined_call_operand.vmem [shape: f32[64,4], index: 1, kind: input, shape index: {}]
  %s2 = inlined_call_operand.vmem [shape: f32[64,4], index: 2, kind: input, shape index: {}]
  %s3 = inlined_call_operand.vmem [shape: f32[10,192], index: 3, kind: input, shape index: {}]
  %s4 = inlined_call_operand.vmem [shape: f32[1,192], index: 4, kind: input, shape index: {}]
  %s5 = inlined_call_operand.vmem [shape: bf16[64,192], index: 5, kind: input, shape index: {}]
  %s6 = inlined_call_operand.vmem [shape: f32[1,64], index: 6, kind: input, shape index: {}]
  %s7 = inlined_call_operand.vmem [shape: f32[64,32], index: 7, kind: input, shape index: {}]
  %s8 = inlined_call_operand.vmem [shape: f32[64,32], index: 8, kind: input, shape index: {}]
  %s9 = inlined_call_operand.vmem [shape: f32[1,32], index: 9, kind: input, shape index: {}]
  %s10 = inlined_call_operand.vmem [shape: f32[32,4], index: 10, kind: input, shape index: {}]
  %s11 = inlined_call_operand.vmem [shape: f32[1,4], index: 11, kind: input, shape index: {}]
  %s12 = inlined_call_operand.vmem [shape: f32[64,4], index: 12, kind: output, shape index: {0}]
  %s13 = inlined_call_operand.hbm [shape: f32[1,1], index: 13, kind: output, shape index: {1}]
  %s14 = inlined_call_operand.hbm [shape: f32[1,1], index: 14, kind: output, shape index: {2}]
  %15 = xla_tuple %s12, %s13, %s14
  %s16 = sld [smem:[#allocation0]]
  $region74: #{naomi_forward.1} parent=0
    _
  %s18 = ssub.s32 1, %s16
  %s19 = scalar_select 0, %s18, %s16
  $region1: #{naomi_forward.1} parent=0
    #allocation4 [shape = 'u8[512]{0}', space=smem, size = 0x200, scoped, tag = 'output window, operand 1, single buffered']
    #allocation5 [shape = 's32[1]{0}', space=sflag, size = 0x4, scoped, tag = 'scoped memory for naomi_forward.1']
    #allocation6 [shape = 'u8[512]{0}', space=smem, size = 0x200, scoped, tag = 'output window, operand 2, single buffered']
    #allocation7 [shape = 's32[1]{0}', space=sflag, size = 0x4, scoped, tag = 'scoped memory for naomi_forward.1']
    %20 = vsyncpa [#allocation5], 0
    %21 = vsyncpa [#allocation7], 0
    // Predicated region
    $region2: #{naomi_forward.1} parent=1 // pred_check
      _
    $region3: #{naomi_forward.1} parent=1 // pred_check_branch
      %23 = sbr.rel (0) target = $region5
    $region4: #{naomi_forward.1} parent=1 // pred_region
      _
    $region5: #{naomi_forward.1} parent=1 // pred_fallthru
      _
    // Predicated region
    $region6: #{naomi_forward.1} parent=1 // pred_check
      _
    $region7: #{naomi_forward.1} parent=1 // pred_check_branch
      %25 = sbr.rel (0) target = $region9
    $region8: #{naomi_forward.1} parent=1 // pred_region
      _
    $region9: #{naomi_forward.1} parent=1 // pred_fallthru
      _
    // Predicated region
    $region10: #{naomi_forward.1} parent=1 // pred_check
      _
    $region11: #{naomi_forward.1} parent=1 // pred_check_branch
      %27 = sbr.rel (0) target = $region13
    $region12: #{naomi_forward.1} parent=1 // pred_region
      _
    $region13: #{naomi_forward.1} parent=1 // pred_fallthru
      _
    // Predicated region
    $region14: #{naomi_forward.1} parent=1 // pred_check
      _
    $region15: #{naomi_forward.1} parent=1 // pred_check_branch
      %29 = sbr.rel (0) target = $region17
    $region16: #{naomi_forward.1} parent=1 // pred_region
      _
    $region17: #{naomi_forward.1} parent=1 // pred_fallthru
      _
    // Predicated region
    $region18: #{naomi_forward.1} parent=1 // pred_check
      _
    $region19: #{naomi_forward.1} parent=1 // pred_check_branch
      %31 = sbr.rel (0) target = $region21
    $region20: #{naomi_forward.1} parent=1 // pred_region
      _
    $region21: #{naomi_forward.1} parent=1 // pred_fallthru
      _
    // Predicated region
    $region22: #{naomi_forward.1} parent=1 // pred_check
      _
    $region23: #{naomi_forward.1} parent=1 // pred_check_branch
      %33 = sbr.rel (0) target = $region25
    $region24: #{naomi_forward.1} parent=1 // pred_region
      _
    $region25: #{naomi_forward.1} parent=1 // pred_fallthru
      _
    // Predicated region
    $region26: #{naomi_forward.1} parent=1 // pred_check
      _
    $region27: #{naomi_forward.1} parent=1 // pred_check_branch
      %35 = sbr.rel (0) target = $region29
    $region28: #{naomi_forward.1} parent=1 // pred_region
      _
    $region29: #{naomi_forward.1} parent=1 // pred_fallthru
      _
    // Predicated region
    $region30: #{naomi_forward.1} parent=1 // pred_check
      _
    $region31: #{naomi_forward.1} parent=1 // pred_check_branch
      %37 = sbr.rel (0) target = $region33
    $region32: #{naomi_forward.1} parent=1 // pred_region
      _
    $region33: #{naomi_forward.1} parent=1 // pred_fallthru
      _
    // Predicated region
    $region34: #{naomi_forward.1} parent=1 // pred_check
      _
    $region35: #{naomi_forward.1} parent=1 // pred_check_branch
      %39 = sbr.rel (0) target = $region37
    $region36: #{naomi_forward.1} parent=1 // pred_region
      _
    $region37: #{naomi_forward.1} parent=1 // pred_fallthru
      _
    // Predicated region
    $region38: #{naomi_forward.1} parent=1 // pred_check
      _
    $region39: #{naomi_forward.1} parent=1 // pred_check_branch
      %41 = sbr.rel (0) target = $region41
    $region40: #{naomi_forward.1} parent=1 // pred_region
      _
    $region41: #{naomi_forward.1} parent=1 // pred_fallthru
      _
    // Predicated region
    $region42: #{naomi_forward.1} parent=1 // pred_check
      _
    $region43: #{naomi_forward.1} parent=1 // pred_check_branch
      %43 = sbr.rel (0) target = $region45
    $region44: #{naomi_forward.1} parent=1 // pred_region
      _
    $region45: #{naomi_forward.1} parent=1 // pred_fallthru
      _
    // Predicated region
    $region46: #{naomi_forward.1} parent=1 // pred_check
      _
    $region47: #{naomi_forward.1} parent=1 // pred_check_branch
      %45 = sbr.rel (0) target = $region49
    $region48: #{naomi_forward.1} parent=1 // pred_region
      _
    $region49: #{naomi_forward.1} parent=1 // pred_fallthru
      _
    %v47 = vld [vmem:[%s0] sm:$0xff]
    %v48 = vld [vmem:[%s0 + $0x8] sm:$0xff]
    %v49 = vld [vmem:[%s0 + $0x10] sm:$0xff]
    %v50 = vld [vmem:[%s0 + $0x18] sm:$0xff]
    %v51 = vld [vmem:[%s0 + $0x20] sm:$0xff]
    %v52 = vld [vmem:[%s0 + $0x28] sm:$0xff]
    %v53 = vld [vmem:[%s0 + $0x30] sm:$0xff]
    %v54 = vld [vmem:[%s0 + $0x38] sm:$0xff]
    %v55 = vld [vmem:[%s3] sm:$0xff]
    %v56 = vld [vmem:[%s3 + $0x8] sm:$0xff]
    %v57 = vld [vmem:[%s3 + $0x10] sm:$0x3]
    %v58 = vld [vmem:[%s3 + $0x18] sm:$0x3]
    %v59 = vld [vmem:[%s4] sm:$0x3]
    %v61 = vperm.slane %v59, 0
    %v62 = vperm.slane %v59, 1
    %vm65 = vcmask 80896
    %v67 = vsel %vm65, %v47, 0
    %v70 = vsel %vm65, %v48, 0
    %v73 = vsel %vm65, %v49, 0
    %v76 = vsel %vm65, %v50, 0
    %v79 = vsel %vm65, %v51, 0
    %v82 = vsel %vm65, %v52, 0
    %v85 = vsel %vm65, %v53, 0
    %v88 = vsel %vm65, %v54, 0
    %vm90 = vcmask 1041408
    %v92 = vsel %vm90, %v57, 0
    %v95 = vsel %vm90, %v58, 0
    %97 = vmatpush.msra.mxu0 0.0
    %98 = vmatpush.msra.mxu0 0.0
    %99 = vmatpush.msra.mxu0 0.0
    %100 = vmatpush.msra.mxu0 0.0
    %101 = vmatpush.msra.mxu0 0.0
    %102 = vmatpush.msra.mxu0 0.0
    %103 = vmatpush.msra.mxu0 0.0
    %104 = vmatpush.msra.mxu0 0.0
    %105 = vmatpush.msra.mxu0 0.0
    %106 = vmatpush.msra.mxu0 0.0
    %107 = vmatpush.msra.mxu0 0.0
    %108 = vmatpush.msra.mxu0 0.0
    %109 = vmatpush.msra.mxu0 0.0
    %110 = vmatpush.msra.mxu0 0.0
    %111 = vmatpush.msra.mxu0 %v92
    %112 = vmatpush.msra.mxu0 %v55
    %113 = vmatmul.f32.gmra.mxu0 %v67
    %v114 = vpop.f32.mrf.mxu0
    %v115 = vadd.f32 %v61, %v114
    %116 = vmatmul.f32.gmra.mxu0 %v70
    %v117 = vpop.f32.mrf.mxu0
    %v118 = vadd.f32 %v61, %v117
    %119 = vmatmul.f32.gmra.mxu0 %v73
    %v120 = vpop.f32.mrf.mxu0
    %v121 = vadd.f32 %v61, %v120
    %122 = vmatmul.f32.gmra.mxu0 %v76
    %v123 = vpop.f32.mrf.mxu0
    %v124 = vadd.f32 %v61, %v123
    %125 = vmatmul.f32.gmra.mxu0 %v79
    %v126 = vpop.f32.mrf.mxu0
    %v127 = vadd.f32 %v61, %v126
    %128 = vmatmul.f32.gmra.mxu0 %v82
    %v129 = vpop.f32.mrf.mxu0
    %v130 = vadd.f32 %v61, %v129
    %131 = vmatmul.f32.gmra.mxu0 %v85
    %v132 = vpop.f32.mrf.mxu0
    %v133 = vadd.f32 %v61, %v132
    %134 = vmatmul.f32.gmra.mxu0 %v88
    %v135 = vpop.f32.mrf.mxu0
    %v136 = vadd.f32 %v61, %v135
    %137 = vdwg.mxu0
    %138 = vmatpush.msra.mxu0 0.0
    %139 = vmatpush.msra.mxu0 0.0
    %140 = vmatpush.msra.mxu0 0.0
    %141 = vmatpush.msra.mxu0 0.0
    %142 = vmatpush.msra.mxu0 0.0
    %143 = vmatpush.msra.mxu0 0.0
    %144 = vmatpush.msra.mxu0 0.0
    %145 = vmatpush.msra.mxu0 0.0
    %146 = vmatpush.msra.mxu0 0.0
    %147 = vmatpush.msra.mxu0 0.0
    %148 = vmatpush.msra.mxu0 0.0
    %149 = vmatpush.msra.mxu0 0.0
    %150 = vmatpush.msra.mxu0 0.0
    %151 = vmatpush.msra.mxu0 0.0
    %152 = vmatpush.msra.mxu0 %v95
    %153 = vmatpush.msra.mxu0 %v56
    %154 = vmatmul.f32.gmra.mxu0 %v67
    %v155 = vpop.f32.mrf.mxu0
    %v156 = vadd.f32 %v62, %v155
    %157 = vmatmul.f32.gmra.mxu0 %v70
    %v158 = vpop.f32.mrf.mxu0
    %v159 = vadd.f32 %v62, %v158
    %160 = vmatmul.f32.gmra.mxu0 %v73
    %v161 = vpop.f32.mrf.mxu0
    %v162 = vadd.f32 %v62, %v161
    %163 = vmatmul.f32.gmra.mxu0 %v76
    %v164 = vpop.f32.mrf.mxu0
    %v165 = vadd.f32 %v62, %v164
    %166 = vmatmul.f32.gmra.mxu0 %v79
    %v167 = vpop.f32.mrf.mxu0
    %v168 = vadd.f32 %v62, %v167
    %169 = vmatmul.f32.gmra.mxu0 %v82
    %v170 = vpop.f32.mrf.mxu0
    %v171 = vadd.f32 %v62, %v170
    %172 = vmatmul.f32.gmra.mxu0 %v85
    %v173 = vpop.f32.mrf.mxu0
    %v174 = vadd.f32 %v62, %v173
    %175 = vmatmul.f32.gmra.mxu0 %v88
    %v176 = vpop.f32.mrf.mxu0
    %v177 = vadd.f32 %v62, %v176
    %178 = vdwg.mxu0
    %v179 = vld [vmem:[%s5] sm:$0xff]
    %v180 = vld [vmem:[%s5 + $0x8] sm:$0xff]
    %v181 = vld [vmem:[%s5 + $0x10] sm:$0xff]
    %v182 = vld [vmem:[%s5 + $0x18] sm:$0xff]
    %v183 = vld [vmem:[%s5 + $0x20] sm:$0xff]
    %v184 = vld [vmem:[%s5 + $0x28] sm:$0xff]
    %v185 = vld [vmem:[%s5 + $0x30] sm:$0xff]
    %v186 = vld [vmem:[%s5 + $0x38] sm:$0xff]
    %v187 = vld [vmem:[%s6] sm:$0x1]
    %v189 = vperm.slane %v187, 0
    %v199 = vunpack.c.l.b16 %v179
    %v200 = vunpack.c.h.b16 %v179
    %v201 = vunpack.c.l.b16 %v180
    %v202 = vunpack.c.h.b16 %v180
    %v203 = vunpack.c.l.b16 %v181
    %v204 = vunpack.c.h.b16 %v181
    %v205 = vunpack.c.l.b16 %v182
    %v206 = vunpack.c.h.b16 %v182
    %v207 = vunpack.c.l.b16 %v183
    %v208 = vunpack.c.h.b16 %v183
    %v209 = vunpack.c.l.b16 %v184
    %v210 = vunpack.c.h.b16 %v184
    %v211 = vunpack.c.l.b16 %v185
    %v212 = vunpack.c.h.b16 %v185
    %v213 = vunpack.c.l.b16 %v186
    %v214 = vunpack.c.h.b16 %v186
    %v215 = vpack.c.b16 %v201, %v199
    %v216 = vpack.c.b16 %v202, %v200
    %v217 = vpack.c.b16 %v205, %v203
    %v218 = vpack.c.b16 %v206, %v204
    %v219 = vpack.c.b16 %v209, %v207
    %v220 = vpack.c.b16 %v210, %v208
    %v221 = vpack.c.b16 %v213, %v211
    %v222 = vpack.c.b16 %v214, %v212
    %vm231 = vcmask 523264
    %v233 = vsel %vm231, 0, 0
    %235 = vmatpush.bf16.msra.mxu0 0
    %236 = vmatpush.bf16.msra.mxu0 0
    %237 = vmatpush.bf16.msra.mxu0 0
    %238 = vmatpush.bf16.msra.mxu0 0
    %239 = vmatpush.bf16.msra.mxu0 %v221
    %240 = vmatpush.bf16.msra.mxu0 %v219
    %241 = vmatpush.bf16.msra.mxu0 %v217
    %242 = vmatpush.bf16.msra.mxu0 %v215
    %243 = vmatmul.bf16.gmra.mxu0 %v233
    %v244 = vpop.f32.mrf.mxu0
    %v245 = vadd.f32 0.0, %v244
    %v246 = vpop.f32.mrf.mxu0
    %247 = vdwg.mxu0
    %248 = vmatpush.bf16.msra.mxu0 0
    %249 = vmatpush.bf16.msra.mxu0 0
    %250 = vmatpush.bf16.msra.mxu0 0
    %251 = vmatpush.bf16.msra.mxu0 0
    %252 = vmatpush.bf16.msra.mxu0 %v222
    %253 = vmatpush.bf16.msra.mxu0 %v220
    %254 = vmatpush.bf16.msra.mxu0 %v218
    %255 = vmatpush.bf16.msra.mxu0 %v216
    %256 = vmatmul.bf16.gmra.mxu0 %v233
    %v257 = vpop.f32.mrf.mxu0
    %v258 = vadd.f32 0.0, %v257
    %v259 = vpop.f32.mrf.mxu0
    %260 = vdwg.mxu0
    %v261 = vadd.f32 %v115, %v245
    %v262 = vxor.u32 %v261, 2147483648
    %v263 = vmul.f32 %v262, 1.442695
    %v264 = vpow.pop %v263
    %v265 = vadd.f32 %v264, 1.0
    %v266 = vrcp.pop %v265
    %v267 = vmul.f32 %v265, %v266
    %v268 = vsub.f32 1.0, %v267
    %v269 = vmul.f32 %v266, %v268
    %v270 = vadd.f32 %v266, %v269
    %vm271 = vweird.f32 %v265
    %vm272 = vweird.f32 %v266
    %vm273 = vmor %vm271, %vm272
    %v274 = vsel %vm273, %v266, %v270
    %v275 = vand.u32 2147483647, %v265
    %vm276 = vcmp.eq.f32.partialorder %v275, 8.507059e+37
    %v277 = vand.u32 %v265, 2147483648
    %v278 = vor.u32 1.1754944e-38, %v277
    %v279 = vsel %vm276, %v278, %v274
    %v280 = vmul.f32 1.0, %v279
    %v281 = vadd.f32 %v258, %v189
    %v282 = vmul.f32 %v280, %v281
    %v283 = vadd.f32 %v156, %v282
    %v284 = vtanh.pop %v283
    %v285 = vsub.f32 1.0, %v280
    %287 = vrot.lane.b32.xlu0 %v284, 64
    %v288 = vpop.permute.xlu0 %287
    %v290 = vmul.f32 %v285, %v288
    %v291 = vmul.f32 %v280, 0.0
    %v292 = vadd.f32 %v290, %v291
    %294 = vrot.lane.b32.xlu0 %v292, 64
    %v295 = vpop.permute.xlu0 %294
    %297 = vst.msk [vmem:[#allocation2] sm:$0xff] %vm231, %v295
    %298 = vst.msk [vmem:[#allocation3 + $0x38] sm:$0xff] %vm231, %v295
    %v299 = vpack.c.bf16 %v292, %v292
    %301 = vrot.lane.b32.xlu0 %v299, 64
    %v302 = vpop.permute.xlu0 %301
    %v304 = vsel %vm231, %v302, 0
    %306 = vmatpush.bf16.msra.mxu0 0
    %307 = vmatpush.bf16.msra.mxu0 0
    %308 = vmatpush.bf16.msra.mxu0 0
    %309 = vmatpush.bf16.msra.mxu0 0
    %310 = vmatpush.bf16.msra.mxu0 %v221
    %311 = vmatpush.bf16.msra.mxu0 %v219
    %312 = vmatpush.bf16.msra.mxu0 %v217
    %313 = vmatpush.bf16.msra.mxu0 %v215
    %314 = vmatmul.bf16.gmra.mxu0 %v304
    %v315 = vpop.f32.mrf.mxu0
    %v316 = vadd.f32 0.0, %v315
    %v317 = vpop.f32.mrf.mxu0
    %318 = vdwg.mxu0
    %319 = vmatpush.bf16.msra.mxu0 0
    %320 = vmatpush.bf16.msra.mxu0 0
    %321 = vmatpush.bf16.msra.mxu0 0
    %322 = vmatpush.bf16.msra.mxu0 0
    %323 = vmatpush.bf16.msra.mxu0 %v222
    %324 = vmatpush.bf16.msra.mxu0 %v220
    %325 = vmatpush.bf16.msra.mxu0 %v218
    %326 = vmatpush.bf16.msra.mxu0 %v216
    %327 = vmatmul.bf16.gmra.mxu0 %v304
    %v328 = vpop.f32.mrf.mxu0
    %v329 = vadd.f32 0.0, %v328
    %v330 = vpop.f32.mrf.mxu0
    %331 = vdwg.mxu0
    %v332 = vadd.f32 %v118, %v316
    %v333 = vxor.u32 %v332, 2147483648
    %v334 = vmul.f32 %v333, 1.442695
    %v335 = vpow.pop %v334
    %v336 = vadd.f32 %v335, 1.0
    %v337 = vrcp.pop %v336
    %v338 = vmul.f32 %v336, %v337
    %v339 = vsub.f32 1.0, %v338
    %v340 = vmul.f32 %v337, %v339
    %v341 = vadd.f32 %v337, %v340
    %vm342 = vweird.f32 %v336
    %vm343 = vweird.f32 %v337
    %vm344 = vmor %vm342, %vm343
    %v345 = vsel %vm344, %v337, %v341
    %v346 = vand.u32 2147483647, %v336
    %vm347 = vcmp.eq.f32.partialorder %v346, 8.507059e+37
    %v348 = vand.u32 %v336, 2147483648
    %v349 = vor.u32 1.1754944e-38, %v348
    %v350 = vsel %vm347, %v349, %v345
    %v351 = vmul.f32 1.0, %v350
    %v352 = vadd.f32 %v329, %v189
    %v353 = vmul.f32 %v351, %v352
    %v354 = vadd.f32 %v159, %v353
    %v355 = vtanh.pop %v354
    %v356 = vsub.f32 1.0, %v351
    %358 = vrot.lane.b32.xlu0 %v355, 64
    %v359 = vpop.permute.xlu0 %358
    %v361 = vmul.f32 %v356, %v359
    %v362 = vmul.f32 %v351, %v292
    %v363 = vadd.f32 %v361, %v362
    %365 = vrot.lane.b32.xlu0 %v363, 64
    %v366 = vpop.permute.xlu0 %365
    %368 = vst.msk [vmem:[#allocation2 + $0x8] sm:$0xff] %vm231, %v366
    %369 = vst.msk [vmem:[#allocation3 + $0x30] sm:$0xff] %vm231, %v366
    %v370 = vpack.c.bf16 %v363, %v363
    %372 = vrot.lane.b32.xlu0 %v370, 64
    %v373 = vpop.permute.xlu0 %372
    %v375 = vsel %vm231, %v373, 0
    %377 = vmatpush.bf16.msra.mxu0 0
    %378 = vmatpush.bf16.msra.mxu0 0
    %379 = vmatpush.bf16.msra.mxu0 0
    %380 = vmatpush.bf16.msra.mxu0 0
    %381 = vmatpush.bf16.msra.mxu0 %v221
    %382 = vmatpush.bf16.msra.mxu0 %v219
    %383 = vmatpush.bf16.msra.mxu0 %v217
    %384 = vmatpush.bf16.msra.mxu0 %v215
    %385 = vmatmul.bf16.gmra.mxu0 %v375
    %v386 = vpop.f32.mrf.mxu0
    %v387 = vadd.f32 0.0, %v386
    %v388 = vpop.f32.mrf.mxu0
    %389 = vdwg.mxu0
    %390 = vmatpush.bf16.msra.mxu0 0
    %391 = vmatpush.bf16.msra.mxu0 0
    %392 = vmatpush.bf16.msra.mxu0 0
    %393 = vmatpush.bf16.msra.mxu0 0
    %394 = vmatpush.bf16.msra.mxu0 %v222
    %395 = vmatpush.bf16.msra.mxu0 %v220
    %396 = vmatpush.bf16.msra.mxu0 %v218
    %397 = vmatpush.bf16.msra.mxu0 %v216
    %398 = vmatmul.bf16.gmra.mxu0 %v375
    %v399 = vpop.f32.mrf.mxu0
    %v400 = vadd.f32 0.0, %v399
    %v401 = vpop.f32.mrf.mxu0
    %402 = vdwg.mxu0
    %v403 = vadd.f32 %v121, %v387
    %v404 = vxor.u32 %v403, 2147483648
    %v405 = vmul.f32 %v404, 1.442695
    %v406 = vpow.pop %v405
    %v407 = vadd.f32 %v406, 1.0
    %v408 = vrcp.pop %v407
    %v409 = vmul.f32 %v407, %v408
    %v410 = vsub.f32 1.0, %v409
    %v411 = vmul.f32 %v408, %v410
    %v412 = vadd.f32 %v408, %v411
    %vm413 = vweird.f32 %v407
    %vm414 = vweird.f32 %v408
    %vm415 = vmor %vm413, %vm414
    %v416 = vsel %vm415, %v408, %v412
    %v417 = vand.u32 2147483647, %v407
    %vm418 = vcmp.eq.f32.partialorder %v417, 8.507059e+37
    %v419 = vand.u32 %v407, 2147483648
    %v420 = vor.u32 1.1754944e-38, %v419
    %v421 = vsel %vm418, %v420, %v416
    %v422 = vmul.f32 1.0, %v421
    %v423 = vadd.f32 %v400, %v189
    %v424 = vmul.f32 %v422, %v423
    %v425 = vadd.f32 %v162, %v424
    %v426 = vtanh.pop %v425
    %v427 = vsub.f32 1.0, %v422
    %429 = vrot.lane.b32.xlu0 %v426, 64
    %v430 = vpop.permute.xlu0 %429
    %v432 = vmul.f32 %v427, %v430
    %v433 = vmul.f32 %v422, %v363
    %v434 = vadd.f32 %v432, %v433
    %436 = vrot.lane.b32.xlu0 %v434, 64
    %v437 = vpop.permute.xlu0 %436
    %439 = vst.msk [vmem:[#allocation2 + $0x10] sm:$0xff] %vm231, %v437
    %440 = vst.msk [vmem:[#allocation3 + $0x28] sm:$0xff] %vm231, %v437
    %v441 = vpack.c.bf16 %v434, %v434
    %443 = vrot.lane.b32.xlu0 %v441, 64
    %v444 = vpop.permute.xlu0 %443
    %v446 = vsel %vm231, %v444, 0
    %448 = vmatpush.bf16.msra.mxu0 0
    %449 = vmatpush.bf16.msra.mxu0 0
    %450 = vmatpush.bf16.msra.mxu0 0
    %451 = vmatpush.bf16.msra.mxu0 0
    %452 = vmatpush.bf16.msra.mxu0 %v221
    %453 = vmatpush.bf16.msra.mxu0 %v219
    %454 = vmatpush.bf16.msra.mxu0 %v217
    %455 = vmatpush.bf16.msra.mxu0 %v215
    %456 = vmatmul.bf16.gmra.mxu0 %v446
    %v457 = vpop.f32.mrf.mxu0
    %v458 = vadd.f32 0.0, %v457
    %v459 = vpop.f32.mrf.mxu0
    %460 = vdwg.mxu0
    %461 = vmatpush.bf16.msra.mxu0 0
    %462 = vmatpush.bf16.msra.mxu0 0
    %463 = vmatpush.bf16.msra.mxu0 0
    %464 = vmatpush.bf16.msra.mxu0 0
    %465 = vmatpush.bf16.msra.mxu0 %v222
    %466 = vmatpush.bf16.msra.mxu0 %v220
    %467 = vmatpush.bf16.msra.mxu0 %v218
    %468 = vmatpush.bf16.msra.mxu0 %v216
    %469 = vmatmul.bf16.gmra.mxu0 %v446
    %v470 = vpop.f32.mrf.mxu0
    %v471 = vadd.f32 0.0, %v470
    %v472 = vpop.f32.mrf.mxu0
    %473 = vdwg.mxu0
    %v474 = vadd.f32 %v124, %v458
    %v475 = vxor.u32 %v474, 2147483648
    %v476 = vmul.f32 %v475, 1.442695
    %v477 = vpow.pop %v476
    %v478 = vadd.f32 %v477, 1.0
    %v479 = vrcp.pop %v478
    %v480 = vmul.f32 %v478, %v479
    %v481 = vsub.f32 1.0, %v480
    %v482 = vmul.f32 %v479, %v481
    %v483 = vadd.f32 %v479, %v482
    %vm484 = vweird.f32 %v478
    %vm485 = vweird.f32 %v479
    %vm486 = vmor %vm484, %vm485
    %v487 = vsel %vm486, %v479, %v483
    %v488 = vand.u32 2147483647, %v478
    %vm489 = vcmp.eq.f32.partialorder %v488, 8.507059e+37
    %v490 = vand.u32 %v478, 2147483648
    %v491 = vor.u32 1.1754944e-38, %v490
    %v492 = vsel %vm489, %v491, %v487
    %v493 = vmul.f32 1.0, %v492
    %v494 = vadd.f32 %v471, %v189
    %v495 = vmul.f32 %v493, %v494
    %v496 = vadd.f32 %v165, %v495
    %v497 = vtanh.pop %v496
    %v498 = vsub.f32 1.0, %v493
    %500 = vrot.lane.b32.xlu0 %v497, 64
    %v501 = vpop.permute.xlu0 %500
    %v503 = vmul.f32 %v498, %v501
    %v504 = vmul.f32 %v493, %v434
    %v505 = vadd.f32 %v503, %v504
    %507 = vrot.lane.b32.xlu0 %v505, 64
    %v508 = vpop.permute.xlu0 %507
    %510 = vst.msk [vmem:[#allocation2 + $0x18] sm:$0xff] %vm231, %v508
    %511 = vst.msk [vmem:[#allocation3 + $0x20] sm:$0xff] %vm231, %v508
    %v512 = vpack.c.bf16 %v505, %v505
    %514 = vrot.lane.b32.xlu0 %v512, 64
    %v515 = vpop.permute.xlu0 %514
    %v517 = vsel %vm231, %v515, 0
    %519 = vmatpush.bf16.msra.mxu0 0
    %520 = vmatpush.bf16.msra.mxu0 0
    %521 = vmatpush.bf16.msra.mxu0 0
    %522 = vmatpush.bf16.msra.mxu0 0
    %523 = vmatpush.bf16.msra.mxu0 %v221
    %524 = vmatpush.bf16.msra.mxu0 %v219
    %525 = vmatpush.bf16.msra.mxu0 %v217
    %526 = vmatpush.bf16.msra.mxu0 %v215
    %527 = vmatmul.bf16.gmra.mxu0 %v517
    %v528 = vpop.f32.mrf.mxu0
    %v529 = vadd.f32 0.0, %v528
    %v530 = vpop.f32.mrf.mxu0
    %531 = vdwg.mxu0
    %532 = vmatpush.bf16.msra.mxu0 0
    %533 = vmatpush.bf16.msra.mxu0 0
    %534 = vmatpush.bf16.msra.mxu0 0
    %535 = vmatpush.bf16.msra.mxu0 0
    %536 = vmatpush.bf16.msra.mxu0 %v222
    %537 = vmatpush.bf16.msra.mxu0 %v220
    %538 = vmatpush.bf16.msra.mxu0 %v218
    %539 = vmatpush.bf16.msra.mxu0 %v216
    %540 = vmatmul.bf16.gmra.mxu0 %v517
    %v541 = vpop.f32.mrf.mxu0
    %v542 = vadd.f32 0.0, %v541
    %v543 = vpop.f32.mrf.mxu0
    %544 = vdwg.mxu0
    %v545 = vadd.f32 %v127, %v529
    %v546 = vxor.u32 %v545, 2147483648
    %v547 = vmul.f32 %v546, 1.442695
    %v548 = vpow.pop %v547
    %v549 = vadd.f32 %v548, 1.0
    %v550 = vrcp.pop %v549
    %v551 = vmul.f32 %v549, %v550
    %v552 = vsub.f32 1.0, %v551
    %v553 = vmul.f32 %v550, %v552
    %v554 = vadd.f32 %v550, %v553
    %vm555 = vweird.f32 %v549
    %vm556 = vweird.f32 %v550
    %vm557 = vmor %vm555, %vm556
    %v558 = vsel %vm557, %v550, %v554
    %v559 = vand.u32 2147483647, %v549
    %vm560 = vcmp.eq.f32.partialorder %v559, 8.507059e+37
    %v561 = vand.u32 %v549, 2147483648
    %v562 = vor.u32 1.1754944e-38, %v561
    %v563 = vsel %vm560, %v562, %v558
    %v564 = vmul.f32 1.0, %v563
    %v565 = vadd.f32 %v542, %v189
    %v566 = vmul.f32 %v564, %v565
    %v567 = vadd.f32 %v168, %v566
    %v568 = vtanh.pop %v567
    %v569 = vsub.f32 1.0, %v564
    %571 = vrot.lane.b32.xlu0 %v568, 64
    %v572 = vpop.permute.xlu0 %571
    %v574 = vmul.f32 %v569, %v572
    %v575 = vmul.f32 %v564, %v505
    %v576 = vadd.f32 %v574, %v575
    %578 = vrot.lane.b32.xlu0 %v576, 64
    %v579 = vpop.permute.xlu0 %578
    %581 = vst.msk [vmem:[#allocation2 + $0x20] sm:$0xff] %vm231, %v579
    %582 = vst.msk [vmem:[#allocation3 + $0x18] sm:$0xff] %vm231, %v579
    %v583 = vpack.c.bf16 %v576, %v576
    %585 = vrot.lane.b32.xlu0 %v583, 64
    %v586 = vpop.permute.xlu0 %585
    %v588 = vsel %vm231, %v586, 0
    %590 = vmatpush.bf16.msra.mxu0 0
    %591 = vmatpush.bf16.msra.mxu0 0
    %592 = vmatpush.bf16.msra.mxu0 0
    %593 = vmatpush.bf16.msra.mxu0 0
    %594 = vmatpush.bf16.msra.mxu0 %v221
    %595 = vmatpush.bf16.msra.mxu0 %v219
    %596 = vmatpush.bf16.msra.mxu0 %v217
    %597 = vmatpush.bf16.msra.mxu0 %v215
    %598 = vmatmul.bf16.gmra.mxu0 %v588
    %v599 = vpop.f32.mrf.mxu0
    %v600 = vadd.f32 0.0, %v599
    %v601 = vpop.f32.mrf.mxu0
    %602 = vdwg.mxu0
    %603 = vmatpush.bf16.msra.mxu0 0
    %604 = vmatpush.bf16.msra.mxu0 0
    %605 = vmatpush.bf16.msra.mxu0 0
    %606 = vmatpush.bf16.msra.mxu0 0
    %607 = vmatpush.bf16.msra.mxu0 %v222
    %608 = vmatpush.bf16.msra.mxu0 %v220
    %609 = vmatpush.bf16.msra.mxu0 %v218
    %610 = vmatpush.bf16.msra.mxu0 %v216
    %611 = vmatmul.bf16.gmra.mxu0 %v588
    %v612 = vpop.f32.mrf.mxu0
    %v613 = vadd.f32 0.0, %v612
    %v614 = vpop.f32.mrf.mxu0
    %615 = vdwg.mxu0
    %v616 = vadd.f32 %v130, %v600
    %v617 = vxor.u32 %v616, 2147483648
    %v618 = vmul.f32 %v617, 1.442695
    %v619 = vpow.pop %v618
    %v620 = vadd.f32 %v619, 1.0
    %v621 = vrcp.pop %v620
    %v622 = vmul.f32 %v620, %v621
    %v623 = vsub.f32 1.0, %v622
    %v624 = vmul.f32 %v621, %v623
    %v625 = vadd.f32 %v621, %v624
    %vm626 = vweird.f32 %v620
    %vm627 = vweird.f32 %v621
    %vm628 = vmor %vm626, %vm627
    %v629 = vsel %vm628, %v621, %v625
    %v630 = vand.u32 2147483647, %v620
    %vm631 = vcmp.eq.f32.partialorder %v630, 8.507059e+37
    %v632 = vand.u32 %v620, 2147483648
    %v633 = vor.u32 1.1754944e-38, %v632
    %v634 = vsel %vm631, %v633, %v629
    %v635 = vmul.f32 1.0, %v634
    %v636 = vadd.f32 %v613, %v189
    %v637 = vmul.f32 %v635, %v636
    %v638 = vadd.f32 %v171, %v637
    %v639 = vtanh.pop %v638
    %v640 = vsub.f32 1.0, %v635
    %642 = vrot.lane.b32.xlu0 %v639, 64
    %v643 = vpop.permute.xlu0 %642
    %v645 = vmul.f32 %v640, %v643
    %v646 = vmul.f32 %v635, %v576
    %v647 = vadd.f32 %v645, %v646
    %649 = vrot.lane.b32.xlu0 %v647, 64
    %v650 = vpop.permute.xlu0 %649
    %652 = vst.msk [vmem:[#allocation2 + $0x28] sm:$0xff] %vm231, %v650
    %653 = vst.msk [vmem:[#allocation3 + $0x10] sm:$0xff] %vm231, %v650
    %v654 = vpack.c.bf16 %v647, %v647
    %656 = vrot.lane.b32.xlu0 %v654, 64
    %v657 = vpop.permute.xlu0 %656
    %v659 = vsel %vm231, %v657, 0
    %661 = vmatpush.bf16.msra.mxu0 0
    %662 = vmatpush.bf16.msra.mxu0 0
    %663 = vmatpush.bf16.msra.mxu0 0
    %664 = vmatpush.bf16.msra.mxu0 0
    %665 = vmatpush.bf16.msra.mxu0 %v221
    %666 = vmatpush.bf16.msra.mxu0 %v219
    %667 = vmatpush.bf16.msra.mxu0 %v217
    %668 = vmatpush.bf16.msra.mxu0 %v215
    %669 = vmatmul.bf16.gmra.mxu0 %v659
    %v670 = vpop.f32.mrf.mxu0
    %v671 = vadd.f32 0.0, %v670
    %v672 = vpop.f32.mrf.mxu0
    %673 = vdwg.mxu0
    %674 = vmatpush.bf16.msra.mxu0 0
    %675 = vmatpush.bf16.msra.mxu0 0
    %676 = vmatpush.bf16.msra.mxu0 0
    %677 = vmatpush.bf16.msra.mxu0 0
    %678 = vmatpush.bf16.msra.mxu0 %v222
    %679 = vmatpush.bf16.msra.mxu0 %v220
    %680 = vmatpush.bf16.msra.mxu0 %v218
    %681 = vmatpush.bf16.msra.mxu0 %v216
    %682 = vmatmul.bf16.gmra.mxu0 %v659
    %v683 = vpop.f32.mrf.mxu0
    %v684 = vadd.f32 0.0, %v683
    %v685 = vpop.f32.mrf.mxu0
    %686 = vdwg.mxu0
    %v687 = vadd.f32 %v133, %v671
    %v688 = vxor.u32 %v687, 2147483648
    %v689 = vmul.f32 %v688, 1.442695
    %v690 = vpow.pop %v689
    %v691 = vadd.f32 %v690, 1.0
    %v692 = vrcp.pop %v691
    %v693 = vmul.f32 %v691, %v692
    %v694 = vsub.f32 1.0, %v693
    %v695 = vmul.f32 %v692, %v694
    %v696 = vadd.f32 %v692, %v695
    %vm697 = vweird.f32 %v691
    %vm698 = vweird.f32 %v692
    %vm699 = vmor %vm697, %vm698
    %v700 = vsel %vm699, %v692, %v696
    %v701 = vand.u32 2147483647, %v691
    %vm702 = vcmp.eq.f32.partialorder %v701, 8.507059e+37
    %v703 = vand.u32 %v691, 2147483648
    %v704 = vor.u32 1.1754944e-38, %v703
    %v705 = vsel %vm702, %v704, %v700
    %v706 = vmul.f32 1.0, %v705
    %v707 = vadd.f32 %v684, %v189
    %v708 = vmul.f32 %v706, %v707
    %v709 = vadd.f32 %v174, %v708
    %v710 = vtanh.pop %v709
    %v711 = vsub.f32 1.0, %v706
    %713 = vrot.lane.b32.xlu0 %v710, 64
    %v714 = vpop.permute.xlu0 %713
    %v716 = vmul.f32 %v711, %v714
    %v717 = vmul.f32 %v706, %v647
    %v718 = vadd.f32 %v716, %v717
    %720 = vrot.lane.b32.xlu0 %v718, 64
    %v721 = vpop.permute.xlu0 %720
    %723 = vst.msk [vmem:[#allocation2 + $0x30] sm:$0xff] %vm231, %v721
    %724 = vst.msk [vmem:[#allocation3 + $0x8] sm:$0xff] %vm231, %v721
    %v725 = vpack.c.bf16 %v718, %v718
    %727 = vrot.lane.b32.xlu0 %v725, 64
    %v728 = vpop.permute.xlu0 %727
    %v730 = vsel %vm231, %v728, 0
    %732 = vmatpush.bf16.msra.mxu0 0
    %733 = vmatpush.bf16.msra.mxu0 0
    %734 = vmatpush.bf16.msra.mxu0 0
    %735 = vmatpush.bf16.msra.mxu0 0
    %736 = vmatpush.bf16.msra.mxu0 %v221
    %737 = vmatpush.bf16.msra.mxu0 %v219
    %738 = vmatpush.bf16.msra.mxu0 %v217
    %739 = vmatpush.bf16.msra.mxu0 %v215
    %740 = vmatmul.bf16.gmra.mxu0 %v730
    %v741 = vpop.f32.mrf.mxu0
    %v742 = vadd.f32 0.0, %v741
    %v743 = vpop.f32.mrf.mxu0
    %744 = vdwg.mxu0
    %745 = vmatpush.bf16.msra.mxu0 0
    %746 = vmatpush.bf16.msra.mxu0 0
    %747 = vmatpush.bf16.msra.mxu0 0
    %748 = vmatpush.bf16.msra.mxu0 0
    %749 = vmatpush.bf16.msra.mxu0 %v222
    %750 = vmatpush.bf16.msra.mxu0 %v220
    %751 = vmatpush.bf16.msra.mxu0 %v218
    %752 = vmatpush.bf16.msra.mxu0 %v216
    %753 = vmatmul.bf16.gmra.mxu0 %v730
    %v754 = vpop.f32.mrf.mxu0
    %v755 = vadd.f32 0.0, %v754
    %v756 = vpop.f32.mrf.mxu0
    %757 = vdwg.mxu0
    %v758 = vadd.f32 %v136, %v742
    %v759 = vxor.u32 %v758, 2147483648
    %v760 = vmul.f32 %v759, 1.442695
    %v761 = vpow.pop %v760
    %v762 = vadd.f32 %v761, 1.0
    %v763 = vrcp.pop %v762
    %v764 = vmul.f32 %v762, %v763
    %v765 = vsub.f32 1.0, %v764
    %v766 = vmul.f32 %v763, %v765
    %v767 = vadd.f32 %v763, %v766
    %vm768 = vweird.f32 %v762
    %vm769 = vweird.f32 %v763
    %vm770 = vmor %vm768, %vm769
    %v771 = vsel %vm770, %v763, %v767
    %v772 = vand.u32 2147483647, %v762
    %vm773 = vcmp.eq.f32.partialorder %v772, 8.507059e+37
    %v774 = vand.u32 %v762, 2147483648
    %v775 = vor.u32 1.1754944e-38, %v774
    %v776 = vsel %vm773, %v775, %v771
    %v777 = vmul.f32 1.0, %v776
    %v778 = vadd.f32 %v755, %v189
    %v779 = vmul.f32 %v777, %v778
    %v780 = vadd.f32 %v177, %v779
    %v781 = vtanh.pop %v780
    %v782 = vsub.f32 1.0, %v777
    %784 = vrot.lane.b32.xlu0 %v781, 64
    %v785 = vpop.permute.xlu0 %784
    %v787 = vmul.f32 %v782, %v785
    %v788 = vmul.f32 %v777, %v718
    %v789 = vadd.f32 %v787, %v788
    %791 = vrot.lane.b32.xlu0 %v789, 64
    %v792 = vpop.permute.xlu0 %791
    %794 = vst.msk [vmem:[#allocation2 + $0x38] sm:$0xff] %vm231, %v792
    %795 = vst.msk [vmem:[#allocation3] sm:$0xff] %vm231, %v792
    %v796 = vld [vmem:[#allocation2] sm:$0xff]
    %v797 = vld [vmem:[#allocation2 + $0x8] sm:$0xff]
    %v798 = vld [vmem:[#allocation2 + $0x10] sm:$0xff]
    %v799 = vld [vmem:[#allocation2 + $0x18] sm:$0xff]
    %v800 = vld [vmem:[#allocation2 + $0x20] sm:$0xff]
    %v801 = vld [vmem:[#allocation2 + $0x28] sm:$0xff]
    %v802 = vld [vmem:[#allocation2 + $0x30] sm:$0xff]
    %v803 = vld [vmem:[#allocation2 + $0x38] sm:$0xff]
    %v804 = vld [vmem:[%s7] sm:$0xff]
    %v805 = vld [vmem:[%s7 + $0x8] sm:$0xff]
    %v806 = vld [vmem:[%s7 + $0x10] sm:$0xff]
    %v807 = vld [vmem:[%s7 + $0x18] sm:$0xff]
    %v808 = vld [vmem:[%s7 + $0x20] sm:$0xff]
    %v809 = vld [vmem:[%s7 + $0x28] sm:$0xff]
    %v810 = vld [vmem:[%s7 + $0x30] sm:$0xff]
    %v811 = vld [vmem:[%s7 + $0x38] sm:$0xff]
    %v812 = vld [vmem:[#allocation3] sm:$0xff]
    %v813 = vld [vmem:[#allocation3 + $0x8] sm:$0xff]
    %v814 = vld [vmem:[#allocation3 + $0x10] sm:$0xff]
    %v815 = vld [vmem:[#allocation3 + $0x18] sm:$0xff]
    %v816 = vld [vmem:[#allocation3 + $0x20] sm:$0xff]
    %v817 = vld [vmem:[#allocation3 + $0x28] sm:$0xff]
    %v818 = vld [vmem:[#allocation3 + $0x30] sm:$0xff]
    %v819 = vld [vmem:[#allocation3 + $0x38] sm:$0xff]
    %v820 = vld [vmem:[%s8] sm:$0xff]
    %v821 = vld [vmem:[%s8 + $0x8] sm:$0xff]
    %v822 = vld [vmem:[%s8 + $0x10] sm:$0xff]
    %v823 = vld [vmem:[%s8 + $0x18] sm:$0xff]
    %v824 = vld [vmem:[%s8 + $0x20] sm:$0xff]
    %v825 = vld [vmem:[%s8 + $0x28] sm:$0xff]
    %v826 = vld [vmem:[%s8 + $0x30] sm:$0xff]
    %v827 = vld [vmem:[%s8 + $0x38] sm:$0xff]
    %v829 = vsel %vm231, %v812, 0
    %v832 = vsel %vm231, %v813, 0
    %v835 = vsel %vm231, %v814, 0
    %v838 = vsel %vm231, %v815, 0
    %v841 = vsel %vm231, %v816, 0
    %v844 = vsel %vm231, %v817, 0
    %v847 = vsel %vm231, %v818, 0
    %v850 = vsel %vm231, %v819, 0
    %852 = vmatpush.msra.mxu0 0.0
    %853 = vmatpush.msra.mxu0 0.0
    %854 = vmatpush.msra.mxu0 0.0
    %855 = vmatpush.msra.mxu0 0.0
    %856 = vmatpush.msra.mxu0 0.0
    %857 = vmatpush.msra.mxu0 0.0
    %858 = vmatpush.msra.mxu0 0.0
    %859 = vmatpush.msra.mxu0 0.0
    %860 = vmatpush.msra.mxu0 %v827
    %861 = vmatpush.msra.mxu0 %v826
    %862 = vmatpush.msra.mxu0 %v825
    %863 = vmatpush.msra.mxu0 %v824
    %864 = vmatpush.msra.mxu0 %v823
    %865 = vmatpush.msra.mxu0 %v822
    %866 = vmatpush.msra.mxu0 %v821
    %867 = vmatpush.msra.mxu0 %v820
    %868 = vmatmul.f32.gmra.mxu0 %v829
    %v869 = vpop.f32.mrf.mxu0
    %v870 = vadd.f32 0.0, %v869
    %871 = vmatmul.f32.gmra.mxu0 %v832
    %v872 = vpop.f32.mrf.mxu0
    %v873 = vadd.f32 0.0, %v872
    %874 = vmatmul.f32.gmra.mxu0 %v835
    %v875 = vpop.f32.mrf.mxu0
    %v876 = vadd.f32 0.0, %v875
    %877 = vmatmul.f32.gmra.mxu0 %v838
    %v878 = vpop.f32.mrf.mxu0
    %v879 = vadd.f32 0.0, %v878
    %880 = vmatmul.f32.gmra.mxu0 %v841
    %v881 = vpop.f32.mrf.mxu0
    %v882 = vadd.f32 0.0, %v881
    %883 = vmatmul.f32.gmra.mxu0 %v844
    %v884 = vpop.f32.mrf.mxu0
    %v885 = vadd.f32 0.0, %v884
    %886 = vmatmul.f32.gmra.mxu0 %v847
    %v887 = vpop.f32.mrf.mxu0
    %v888 = vadd.f32 0.0, %v887
    %889 = vmatmul.f32.gmra.mxu0 %v850
    %v890 = vpop.f32.mrf.mxu0
    %v891 = vadd.f32 0.0, %v890
    %892 = vdwg.mxu0
    %v894 = vsel %vm231, %v796, 0
    %v897 = vsel %vm231, %v797, 0
    %v900 = vsel %vm231, %v798, 0
    %v903 = vsel %vm231, %v799, 0
    %v906 = vsel %vm231, %v800, 0
    %v909 = vsel %vm231, %v801, 0
    %v912 = vsel %vm231, %v802, 0
    %v915 = vsel %vm231, %v803, 0
    %917 = vmatpush.msra.mxu0 0.0
    %918 = vmatpush.msra.mxu0 0.0
    %919 = vmatpush.msra.mxu0 0.0
    %920 = vmatpush.msra.mxu0 0.0
    %921 = vmatpush.msra.mxu0 0.0
    %922 = vmatpush.msra.mxu0 0.0
    %923 = vmatpush.msra.mxu0 0.0
    %924 = vmatpush.msra.mxu0 0.0
    %925 = vmatpush.msra.mxu0 %v811
    %926 = vmatpush.msra.mxu0 %v810
    %927 = vmatpush.msra.mxu0 %v809
    %928 = vmatpush.msra.mxu0 %v808
    %929 = vmatpush.msra.mxu0 %v807
    %930 = vmatpush.msra.mxu0 %v806
    %931 = vmatpush.msra.mxu0 %v805
    %932 = vmatpush.msra.mxu0 %v804
    %933 = vmatmul.f32.gmra.mxu0 %v894
    %v934 = vpop.f32.mrf.mxu0
    %v935 = vadd.f32 %v870, %v934
    %936 = vmatmul.f32.gmra.mxu0 %v897
    %v937 = vpop.f32.mrf.mxu0
    %v938 = vadd.f32 %v873, %v937
    %939 = vmatmul.f32.gmra.mxu0 %v900
    %v940 = vpop.f32.mrf.mxu0
    %v941 = vadd.f32 %v876, %v940
    %942 = vmatmul.f32.gmra.mxu0 %v903
    %v943 = vpop.f32.mrf.mxu0
    %v944 = vadd.f32 %v879, %v943
    %945 = vmatmul.f32.gmra.mxu0 %v906
    %v946 = vpop.f32.mrf.mxu0
    %v947 = vadd.f32 %v882, %v946
    %948 = vmatmul.f32.gmra.mxu0 %v909
    %v949 = vpop.f32.mrf.mxu0
    %v950 = vadd.f32 %v885, %v949
    %951 = vmatmul.f32.gmra.mxu0 %v912
    %v952 = vpop.f32.mrf.mxu0
    %v953 = vadd.f32 %v888, %v952
    %954 = vmatmul.f32.gmra.mxu0 %v915
    %v955 = vpop.f32.mrf.mxu0
    %v956 = vadd.f32 %v891, %v955
    %957 = vdwg.mxu0
    %v958 = vld [vmem:[%s9] sm:$0x1]
    %v960 = vperm.slane %v958, 0
    %v962 = vadd.f32 %v935, %v960
    %v963 = vadd.f32 %v938, %v960
    %v964 = vadd.f32 %v941, %v960
    %v965 = vadd.f32 %v944, %v960
    %v966 = vadd.f32 %v947, %v960
    %v967 = vadd.f32 %v950, %v960
    %v968 = vadd.f32 %v953, %v960
    %v969 = vadd.f32 %v956, %v960
    %v970 = vmax.f32 %v962, 0.0
    %v971 = vmax.f32 %v963, 0.0
    %v972 = vmax.f32 %v964, 0.0
    %v973 = vmax.f32 %v965, 0.0
    %v974 = vmax.f32 %v966, 0.0
    %v975 = vmax.f32 %v967, 0.0
    %v976 = vmax.f32 %v968, 0.0
    %v977 = vmax.f32 %v969, 0.0
    %v978 = vld [vmem:[%s10] sm:$0xff]
    %v979 = vld [vmem:[%s10 + $0x8] sm:$0xff]
    %v980 = vld [vmem:[%s10 + $0x10] sm:$0xff]
    %v981 = vld [vmem:[%s10 + $0x18] sm:$0xff]
    %v982 = vld [vmem:[%s11] sm:$0x1]
    %v984 = vperm.slane %v982, 0
    %vm986 = vcmask 261120
    %v988 = vsel %vm986, %v970, 0
    %v991 = vsel %vm986, %v971, 0
    %v994 = vsel %vm986, %v972, 0
    %v997 = vsel %vm986, %v973, 0
    %v1000 = vsel %vm986, %v974, 0
    %v1003 = vsel %vm986, %v975, 0
    %v1006 = vsel %vm986, %v976, 0
    %v1009 = vsel %vm986, %v977, 0
    %1011 = vmatpush.msra.mxu0 0.0
    %1012 = vmatpush.msra.mxu0 0.0
    %1013 = vmatpush.msra.mxu0 0.0
    %1014 = vmatpush.msra.mxu0 0.0
    %1015 = vmatpush.msra.mxu0 0.0
    %1016 = vmatpush.msra.mxu0 0.0
    %1017 = vmatpush.msra.mxu0 0.0
    %1018 = vmatpush.msra.mxu0 0.0
    %1019 = vmatpush.msra.mxu0 0.0
    %1020 = vmatpush.msra.mxu0 0.0
    %1021 = vmatpush.msra.mxu0 0.0
    %1022 = vmatpush.msra.mxu0 0.0
    %1023 = vmatpush.msra.mxu0 %v981
    %1024 = vmatpush.msra.mxu0 %v980
    %1025 = vmatpush.msra.mxu0 %v979
    %1026 = vmatpush.msra.mxu0 %v978
    %1027 = vmatmul.f32.gmra.mxu0 %v988
    %v1028 = vpop.f32.mrf.mxu0
    %v1029 = vadd.f32 %v984, %v1028
    %1030 = vmatmul.f32.gmra.mxu0 %v991
    %v1031 = vpop.f32.mrf.mxu0
    %v1032 = vadd.f32 %v984, %v1031
    %1033 = vmatmul.f32.gmra.mxu0 %v994
    %v1034 = vpop.f32.mrf.mxu0
    %v1035 = vadd.f32 %v984, %v1034
    %1036 = vmatmul.f32.gmra.mxu0 %v997
    %v1037 = vpop.f32.mrf.mxu0
    %v1038 = vadd.f32 %v984, %v1037
    %1039 = vmatmul.f32.gmra.mxu0 %v1000
    %v1040 = vpop.f32.mrf.mxu0
    %v1041 = vadd.f32 %v984, %v1040
    %1042 = vmatmul.f32.gmra.mxu0 %v1003
    %v1043 = vpop.f32.mrf.mxu0
    %v1044 = vadd.f32 %v984, %v1043
    %1045 = vmatmul.f32.gmra.mxu0 %v1006
    %v1046 = vpop.f32.mrf.mxu0
    %v1047 = vadd.f32 %v984, %v1046
    %1048 = vmatmul.f32.gmra.mxu0 %v1009
    %v1049 = vpop.f32.mrf.mxu0
    %v1050 = vadd.f32 %v984, %v1049
    %1051 = vdwg.mxu0
    %v1052 = vld [vmem:[%s1] sm:$0xff]
    %v1053 = vld [vmem:[%s1 + $0x8] sm:$0xff]
    %v1054 = vld [vmem:[%s1 + $0x10] sm:$0xff]
    %v1055 = vld [vmem:[%s1 + $0x18] sm:$0xff]
    %v1056 = vld [vmem:[%s1 + $0x20] sm:$0xff]
    %v1057 = vld [vmem:[%s1 + $0x28] sm:$0xff]
    %v1058 = vld [vmem:[%s1 + $0x30] sm:$0xff]
    %v1059 = vld [vmem:[%s1 + $0x38] sm:$0xff]
    %v1060 = vld [vmem:[%s2] sm:$0xff]
    %v1061 = vld [vmem:[%s2 + $0x8] sm:$0xff]
    %v1062 = vld [vmem:[%s2 + $0x10] sm:$0xff]
    %v1063 = vld [vmem:[%s2 + $0x18] sm:$0xff]
    %v1064 = vld [vmem:[%s2 + $0x20] sm:$0xff]
    %v1065 = vld [vmem:[%s2 + $0x28] sm:$0xff]
    %v1066 = vld [vmem:[%s2 + $0x30] sm:$0xff]
    %v1067 = vld [vmem:[%s2 + $0x38] sm:$0xff]
    %v1068 = vmul.f32 %v1060, %v1052
    %v1069 = vmul.f32 %v1061, %v1053
    %v1070 = vmul.f32 %v1062, %v1054
    %v1071 = vmul.f32 %v1063, %v1055
    %v1072 = vmul.f32 %v1064, %v1056
    %v1073 = vmul.f32 %v1065, %v1057
    %v1074 = vmul.f32 %v1066, %v1058
    %v1075 = vmul.f32 %v1067, %v1059
    %v1076 = vsub.f32 1.0, %v1060
    %v1077 = vsub.f32 1.0, %v1061
    %v1078 = vsub.f32 1.0, %v1062
    %v1079 = vsub.f32 1.0, %v1063
    %v1080 = vsub.f32 1.0, %v1064
    %v1081 = vsub.f32 1.0, %v1065
    %v1082 = vsub.f32 1.0, %v1066
    %v1083 = vsub.f32 1.0, %v1067
    %v1084 = vmul.f32 %v1076, %v1029
    %v1085 = vmul.f32 %v1077, %v1032
    %v1086 = vmul.f32 %v1078, %v1035
    %v1087 = vmul.f32 %v1079, %v1038
    %v1088 = vmul.f32 %v1080, %v1041
    %v1089 = vmul.f32 %v1081, %v1044
    %v1090 = vmul.f32 %v1082, %v1047
    %v1091 = vmul.f32 %v1083, %v1050
    %v1092 = vadd.f32 %v1068, %v1084
    %v1093 = vadd.f32 %v1069, %v1085
    %v1094 = vadd.f32 %v1070, %v1086
    %v1095 = vadd.f32 %v1071, %v1087
    %v1096 = vadd.f32 %v1072, %v1088
    %v1097 = vadd.f32 %v1073, %v1089
    %v1098 = vadd.f32 %v1074, %v1090
    %v1099 = vadd.f32 %v1075, %v1091
    %vm1100 = vcmask 31744
    %1101 = vst.msk [vmem:[%s12] sm:$0xff] %vm1100, %v1092
    %1102 = vst.msk [vmem:[%s12 + $0x8] sm:$0xff] %vm1100, %v1093
    %1103 = vst.msk [vmem:[%s12 + $0x10] sm:$0xff] %vm1100, %v1094
    %1104 = vst.msk [vmem:[%s12 + $0x18] sm:$0xff] %vm1100, %v1095
    %1105 = vst.msk [vmem:[%s12 + $0x20] sm:$0xff] %vm1100, %v1096
    %1106 = vst.msk [vmem:[%s12 + $0x28] sm:$0xff] %vm1100, %v1097
    %1107 = vst.msk [vmem:[%s12 + $0x30] sm:$0xff] %vm1100, %v1098
    %1108 = vst.msk [vmem:[%s12 + $0x38] sm:$0xff] %vm1100, %v1099
    %v1109 = vlaneseq
    %v1110 = vshrl.u32 %v1109, 7
    %v1111 = vadd.s32 %v1110, 8
    %v1112 = vadd.s32 %v1110, 16
    %v1113 = vadd.s32 %v1110, 24
    %v1114 = vadd.s32 %v1110, 32
    %v1115 = vadd.s32 %v1110, 40
    %v1116 = vadd.s32 %v1110, 48
    %v1117 = vadd.s32 %v1110, 56
    %v1118 = vand.u32 %v1110, 7
    %v1119 = vand.u32 %v1111, 7
    %v1120 = vand.u32 %v1112, 7
    %v1121 = vand.u32 %v1113, 7
    %v1122 = vand.u32 %v1114, 7
    %v1123 = vand.u32 %v1115, 7
    %v1124 = vand.u32 %v1116, 7
    %v1125 = vand.u32 %v1117, 7
    %vm1126 = vcmp.lt.s32.totalorder %v1118, 2
    %vm1127 = vcmp.lt.s32.totalorder %v1119, 2
    %vm1128 = vcmp.lt.s32.totalorder %v1120, 2
    %vm1129 = vcmp.lt.s32.totalorder %v1121, 2
    %vm1130 = vcmp.lt.s32.totalorder %v1122, 2
    %vm1131 = vcmp.lt.s32.totalorder %v1123, 2
    %vm1132 = vcmp.lt.s32.totalorder %v1124, 2
    %vm1133 = vcmp.lt.s32.totalorder %v1125, 2
    %v1134 = vsel %vm1126, 1, 0
    %v1135 = vsel %vm1127, 1, 0
    %v1136 = vsel %vm1128, 1, 0
    %v1137 = vsel %vm1129, 1, 0
    %v1138 = vsel %vm1130, 1, 0
    %v1139 = vsel %vm1131, 1, 0
    %v1140 = vsel %vm1132, 1, 0
    %v1141 = vsel %vm1133, 1, 0
    %v1142 = vcvt.s32.f32 %v1134
    %v1143 = vcvt.s32.f32 %v1135
    %v1144 = vcvt.s32.f32 %v1136
    %v1145 = vcvt.s32.f32 %v1137
    %v1146 = vcvt.s32.f32 %v1138
    %v1147 = vcvt.s32.f32 %v1139
    %v1148 = vcvt.s32.f32 %v1140
    %v1149 = vcvt.s32.f32 %v1141
    %v1150 = vsub.f32 %v1092, %v1052
    %v1151 = vsub.f32 %v1093, %v1053
    %v1152 = vsub.f32 %v1094, %v1054
    %v1153 = vsub.f32 %v1095, %v1055
    %v1154 = vsub.f32 %v1096, %v1056
    %v1155 = vsub.f32 %v1097, %v1057
    %v1156 = vsub.f32 %v1098, %v1058
    %v1157 = vsub.f32 %v1099, %v1059
    %v1158 = vand.u32 2147483647, %v1150
    %v1159 = vand.u32 2147483647, %v1151
    %v1160 = vand.u32 2147483647, %v1152
    %v1161 = vand.u32 2147483647, %v1153
    %v1162 = vand.u32 2147483647, %v1154
    %v1163 = vand.u32 2147483647, %v1155
    %v1164 = vand.u32 2147483647, %v1156
    %v1165 = vand.u32 2147483647, %v1157
    %v1166 = vmul.f32 %v1158, %v1142
    %v1167 = vmul.f32 %v1159, %v1143
    %v1168 = vmul.f32 %v1160, %v1144
    %v1169 = vmul.f32 %v1161, %v1145
    %v1170 = vmul.f32 %v1162, %v1146
    %v1171 = vmul.f32 %v1163, %v1147
    %v1172 = vmul.f32 %v1164, %v1148
    %v1173 = vmul.f32 %v1165, %v1149
    %v1174 = vsel %vm1100, %v1166, 0.0
    %v1175 = vsel %vm1100, %v1167, 0.0
    %v1176 = vadd.f32 %v1174, %v1175
    %v1177 = vsel %vm1100, %v1168, 0.0
    %v1178 = vadd.f32 %v1176, %v1177
    %v1179 = vsel %vm1100, %v1169, 0.0
    %v1180 = vadd.f32 %v1178, %v1179
    %v1181 = vsel %vm1100, %v1170, 0.0
    %v1182 = vadd.f32 %v1180, %v1181
    %v1183 = vsel %vm1100, %v1171, 0.0
    %v1184 = vadd.f32 %v1182, %v1183
    %v1185 = vsel %vm1100, %v1172, 0.0
    %v1186 = vadd.f32 %v1184, %v1185
    %v1187 = vsel %vm1100, %v1173, 0.0
    %v1188 = vadd.f32 %v1186, %v1187
    %1189 = vadd.xlane.f32.xlu0 %v1188
    %v1190 = vpop.xlane.xlu0 %1189
    %v1191 = vrot.slane %v1190, 4
    %v1192 = vadd.f32 %v1190, %v1191
    %v1193 = vrot.slane %v1192, 2
    %v1194 = vadd.f32 %v1192, %v1193
    %v1195 = vrot.slane %v1194, 1
    %v1196 = vadd.f32 %v1194, %v1195
    %s1197 = vtos %v1196
    %v1198 = vrcp.pop 64.0
    %v1199 = vmul.f32 64.0, %v1198
    %v1200 = vsub.f32 1.0, %v1199
    %v1201 = vmul.f32 %v1198, %v1200
    %v1202 = vadd.f32 %v1198, %v1201
    %vm1203 = vweird.f32 %v1198
    %v1204 = vsel %vm1203, %v1198, %v1202
    %s1205 = vtos %v1204
    %s1206 = smul.f32 %s1197, %s1205
    %s1207 = scalar_lea.smem [#allocation4], 0
    %1208 = sst [smem:[%s1207]] %s1206
    %v1209 = vmul.f32 %v1150, %v1150
    %v1210 = vmul.f32 %v1151, %v1151
    %v1211 = vmul.f32 %v1152, %v1152
    %v1212 = vmul.f32 %v1153, %v1153
    %v1213 = vmul.f32 %v1154, %v1154
    %v1214 = vmul.f32 %v1155, %v1155
    %v1215 = vmul.f32 %v1156, %v1156
    %v1216 = vmul.f32 %v1157, %v1157
    %vm1217 = vcmask 15360
    %v1218 = vsel %vm1217, %v1209, 0.0
    %1219 = vadd.xlane.f32.xlu0 %v1218
    %v1220 = vpop.xlane.xlu0 %1219
    %v1221 = vsel %vm1217, %v1210, 0.0
    %1222 = vadd.xlane.f32.xlu0 %v1221
    %v1223 = vpop.xlane.xlu0 %1222
    %v1224 = vsel %vm1217, %v1211, 0.0
    %1225 = vadd.xlane.f32.xlu0 %v1224
    %v1226 = vpop.xlane.xlu0 %1225
    %v1227 = vsel %vm1217, %v1212, 0.0
    %1228 = vadd.xlane.f32.xlu0 %v1227
    %v1229 = vpop.xlane.xlu0 %1228
    %v1230 = vsel %vm1217, %v1213, 0.0
    %1231 = vadd.xlane.f32.xlu0 %v1230
    %v1232 = vpop.xlane.xlu0 %1231
    %v1233 = vsel %vm1217, %v1214, 0.0
    %1234 = vadd.xlane.f32.xlu0 %v1233
    %v1235 = vpop.xlane.xlu0 %1234
    %v1236 = vsel %vm1217, %v1215, 0.0
    %1237 = vadd.xlane.f32.xlu0 %v1236
    %v1238 = vpop.xlane.xlu0 %1237
    %v1239 = vsel %vm1217, %v1216, 0.0
    %1240 = vadd.xlane.f32.xlu0 %v1239
    %v1241 = vpop.xlane.xlu0 %1240
    %v1242 = vrsqrt.pop %v1220
    %v1243 = vmul.f32 %v1242, %v1220
    %v1244 = vmul.f32 %v1243, %v1242
    %v1245 = vmul.f32 0.5, %v1244
    %v1246 = vsub.f32 1.5, %v1245
    %v1247 = vmul.f32 %v1242, %v1246
    %v1248 = vmul.f32 %v1220, %v1247
    %vm1249 = vcmp.eq.f32.partialorder %v1220, inf
    %v1250 = vsel %vm1249, %v1220, %v1248
    %vm1251 = vcmp.eq.f32.partialorder %v1220, 0.0
    %v1252 = vand.u32 %v1220, 2147483648
    %v1253 = vsel %vm1251, %v1252, %v1250
    %v1254 = vrsqrt.pop %v1223
    %v1255 = vmul.f32 %v1254, %v1223
    %v1256 = vmul.f32 %v1255, %v1254
    %v1257 = vmul.f32 0.5, %v1256
    %v1258 = vsub.f32 1.5, %v1257
    %v1259 = vmul.f32 %v1254, %v1258
    %v1260 = vmul.f32 %v1223, %v1259
    %vm1261 = vcmp.eq.f32.partialorder %v1223, inf
    %v1262 = vsel %vm1261, %v1223, %v1260
    %vm1263 = vcmp.eq.f32.partialorder %v1223, 0.0
    %v1264 = vand.u32 %v1223, 2147483648
    %v1265 = vsel %vm1263, %v1264, %v1262
    %v1266 = vrsqrt.pop %v1226
    %v1267 = vmul.f32 %v1266, %v1226
    %v1268 = vmul.f32 %v1267, %v1266
    %v1269 = vmul.f32 0.5, %v1268
    %v1270 = vsub.f32 1.5, %v1269
    %v1271 = vmul.f32 %v1266, %v1270
    %v1272 = vmul.f32 %v1226, %v1271
    %vm1273 = vcmp.eq.f32.partialorder %v1226, inf
    %v1274 = vsel %vm1273, %v1226, %v1272
    %vm1275 = vcmp.eq.f32.partialorder %v1226, 0.0
    %v1276 = vand.u32 %v1226, 2147483648
    %v1277 = vsel %vm1275, %v1276, %v1274
    %v1278 = vrsqrt.pop %v1229
    %v1279 = vmul.f32 %v1278, %v1229
    %v1280 = vmul.f32 %v1279, %v1278
    %v1281 = vmul.f32 0.5, %v1280
    %v1282 = vsub.f32 1.5, %v1281
    %v1283 = vmul.f32 %v1278, %v1282
    %v1284 = vmul.f32 %v1229, %v1283
    %vm1285 = vcmp.eq.f32.partialorder %v1229, inf
    %v1286 = vsel %vm1285, %v1229, %v1284
    %vm1287 = vcmp.eq.f32.partialorder %v1229, 0.0
    %v1288 = vand.u32 %v1229, 2147483648
    %v1289 = vsel %vm1287, %v1288, %v1286
    %v1290 = vrsqrt.pop %v1232
    %v1291 = vmul.f32 %v1290, %v1232
    %v1292 = vmul.f32 %v1291, %v1290
    %v1293 = vmul.f32 0.5, %v1292
    %v1294 = vsub.f32 1.5, %v1293
    %v1295 = vmul.f32 %v1290, %v1294
    %v1296 = vmul.f32 %v1232, %v1295
    %vm1297 = vcmp.eq.f32.partialorder %v1232, inf
    %v1298 = vsel %vm1297, %v1232, %v1296
    %vm1299 = vcmp.eq.f32.partialorder %v1232, 0.0
    %v1300 = vand.u32 %v1232, 2147483648
    %v1301 = vsel %vm1299, %v1300, %v1298
    %v1302 = vrsqrt.pop %v1235
    %v1303 = vmul.f32 %v1302, %v1235
    %v1304 = vmul.f32 %v1303, %v1302
    %v1305 = vmul.f32 0.5, %v1304
    %v1306 = vsub.f32 1.5, %v1305
    %v1307 = vmul.f32 %v1302, %v1306
    %v1308 = vmul.f32 %v1235, %v1307
    %vm1309 = vcmp.eq.f32.partialorder %v1235, inf
    %v1310 = vsel %vm1309, %v1235, %v1308
    %vm1311 = vcmp.eq.f32.partialorder %v1235, 0.0
    %v1312 = vand.u32 %v1235, 2147483648
    %v1313 = vsel %vm1311, %v1312, %v1310
    %v1314 = vrsqrt.pop %v1238
    %v1315 = vmul.f32 %v1314, %v1238
    %v1316 = vmul.f32 %v1315, %v1314
    %v1317 = vmul.f32 0.5, %v1316
    %v1318 = vsub.f32 1.5, %v1317
    %v1319 = vmul.f32 %v1314, %v1318
    %v1320 = vmul.f32 %v1238, %v1319
    %vm1321 = vcmp.eq.f32.partialorder %v1238, inf
    %v1322 = vsel %vm1321, %v1238, %v1320
    %vm1323 = vcmp.eq.f32.partialorder %v1238, 0.0
    %v1324 = vand.u32 %v1238, 2147483648
    %v1325 = vsel %vm1323, %v1324, %v1322
    %v1326 = vrsqrt.pop %v1241
    %v1327 = vmul.f32 %v1326, %v1241
    %v1328 = vmul.f32 %v1327, %v1326
    %v1329 = vmul.f32 0.5, %v1328
    %v1330 = vsub.f32 1.5, %v1329
    %v1331 = vmul.f32 %v1326, %v1330
    %v1332 = vmul.f32 %v1241, %v1331
    %vm1333 = vcmp.eq.f32.partialorder %v1241, inf
    %v1334 = vsel %vm1333, %v1241, %v1332
    %vm1335 = vcmp.eq.f32.partialorder %v1241, 0.0
    %v1336 = vand.u32 %v1241, 2147483648
    %v1337 = vsel %vm1335, %v1336, %v1334
    %v1338 = vmul.f32 %v1253, %v1142
    %v1339 = vmul.f32 %v1265, %v1143
    %v1340 = vmul.f32 %v1277, %v1144
    %v1341 = vmul.f32 %v1289, %v1145
    %v1342 = vmul.f32 %v1301, %v1146
    %v1343 = vmul.f32 %v1313, %v1147
    %v1344 = vmul.f32 %v1325, %v1148
    %v1345 = vmul.f32 %v1337, %v1149
    %vm1346 = vcmask 7168
    %v1347 = vsel %vm1346, %v1338, 0.0
    %v1348 = vsel %vm1346, %v1339, 0.0
    %v1349 = vadd.f32 %v1347, %v1348
    %v1350 = vsel %vm1346, %v1340, 0.0
    %v1351 = vadd.f32 %v1349, %v1350
    %v1352 = vsel %vm1346, %v1341, 0.0
    %v1353 = vadd.f32 %v1351, %v1352
    %v1354 = vsel %vm1346, %v1342, 0.0
    %v1355 = vadd.f32 %v1353, %v1354
    %v1356 = vsel %vm1346, %v1343, 0.0
    %v1357 = vadd.f32 %v1355, %v1356
    %v1358 = vsel %vm1346, %v1344, 0.0
    %v1359 = vadd.f32 %v1357, %v1358
    %v1360 = vsel %vm1346, %v1345, 0.0
    %v1361 = vadd.f32 %v1359, %v1360
    %1362 = vadd.xlane.f32.xlu0 %v1361
    %v1363 = vpop.xlane.xlu0 %1362
    %v1364 = vrot.slane %v1363, 4
    %v1365 = vadd.f32 %v1363, %v1364
    %v1366 = vrot.slane %v1365, 2
    %v1367 = vadd.f32 %v1365, %v1366
    %v1368 = vrot.slane %v1367, 1
    %v1369 = vadd.f32 %v1367, %v1368
    %s1370 = vtos %v1369
    %v1371 = vrcp.pop 16.0
    %v1372 = vmul.f32 16.0, %v1371
    %v1373 = vsub.f32 1.0, %v1372
    %v1374 = vmul.f32 %v1371, %v1373
    %v1375 = vadd.f32 %v1371, %v1374
    %vm1376 = vweird.f32 %v1371
    %v1377 = vsel %vm1376, %v1371, %v1375
    %s1378 = vtos %v1377
    %s1379 = smul.f32 %s1370, %s1378
    %s1380 = scalar_lea.smem [#allocation6], 0
    %1381 = sst [smem:[%s1380]] %s1379
    // Predicated region
    $region50: #{naomi_forward.1} parent=1 // pred_check
      _
    $region51: #{naomi_forward.1} parent=1 // pred_check_branch
      %1383 = sbr.rel (0) target = $region53
    $region52: #{naomi_forward.1} parent=1 // pred_region
      _
    $region53: #{naomi_forward.1} parent=1 // pred_fallthru
      _
    // Predicated region
    $region54: #{naomi_forward.1} parent=1 // pred_check
      _
    $region55: #{naomi_forward.1} parent=1 // pred_check_branch
      %1385 = sbr.rel (0) target = $region57
    $region56: #{naomi_forward.1} parent=1 // pred_region
      %1387 = vsyncadd [#allocation5], 0
      %s1389 = sshll.u32 %s13, 4
      %s1390 = int_to_ptr.hbm [resolvable:$true] %s1389
      %1392 = dma.smem_to_hbm [#allocation4], 16, %s1390, [#allocation5]
    $region57: #{naomi_forward.1} parent=1 // pred_fallthru
      _
    // Predicated region
    $region58: #{naomi_forward.1} parent=1 // pred_check
      _
    $region59: #{naomi_forward.1} parent=1 // pred_check_branch
      %1394 = sbr.rel (0) target = $region61
    $region60: #{naomi_forward.1} parent=1 // pred_region
      %1396 = vsyncadd [#allocation7], 0
      %s1398 = sshll.u32 %s14, 4
      %s1399 = int_to_ptr.hbm [resolvable:$true] %s1398
      %1401 = dma.smem_to_hbm [#allocation6], 16, %s1399, [#allocation7]
    $region61: #{naomi_forward.1} parent=1 // pred_fallthru
      _
    // Predicated region
    $region62: #{naomi_forward.1} parent=1 // pred_check
      _
    $region63: #{naomi_forward.1} parent=1 // pred_check_branch
      %1403 = sbr.rel (0) target = $region65
    $region64: #{naomi_forward.1} parent=1 // pred_region
      _
    $region65: #{naomi_forward.1} parent=1 // pred_fallthru
      _
    // Predicated region
    $region66: #{naomi_forward.1} parent=1 // pred_check
      _
    $region67: #{naomi_forward.1} parent=1 // pred_check_branch
      %1405 = sbr.rel (0) target = $region69
    $region68: #{naomi_forward.1} parent=1 // pred_region
      %1407 = dma.done [#allocation5], 16
    $region69: #{naomi_forward.1} parent=1 // pred_fallthru
      _
    // Predicated region
    $region70: #{naomi_forward.1} parent=1 // pred_check
      _
    $region71: #{naomi_forward.1} parent=1 // pred_check_branch
      %1409 = sbr.rel (0) target = $region73
    $region72: #{naomi_forward.1} parent=1 // pred_region
      %1411 = dma.done [#allocation7], 16
    $region73: #{naomi_forward.1} parent=1 // pred_fallthru
      _
    %1412 = sfence
    %1413 = vsyncpa [#allocation5], 1
    %1414 = vsyncpa [#allocation7], 1

</llo_original>
